<compile_context>
chip_gen: v7x
topology: tpu7x:2x2x1
jax: 0.10.0
libtpu: 0.0.40
codegen_flags: <defaults>
</compile_context>

<pallas_src>
import math
import functools

import jax
import jax.numpy as jnp
from jax import lax
from jax.experimental import pallas as pl
from jax.experimental.pallas import tpu as pltpu


def _round_up(x, m):
    return ((x + m - 1) // m) * m


def _cdiv(a, b):
    return (a + b - 1) // b


def _pick_tiles():
    """Generation-aware (l_tile, n_tile, vmem_limit_bytes, two_tensorcores)."""
    try:
        kind = jax.devices()[0].device_kind.lower()
    except Exception:
        kind = ""
    if "v7" in kind or "7x" in kind:
        # v7x: 64 MiB VMEM / TC, very high HBM BW, 2 TensorCores per chip.
        return 512, 512, 48 * 1024 * 1024, True
    if "v6" in kind:
        # v6e: ridge ~650 FLOP/B -> large L tile to stop re-streaming mv.
        return 1024, 1024, 96 * 1024 * 1024, False
    if "v5" in kind:
        # v5e: 128x128 MXU, already compute-bound at 512.
        return 512, 512, 96 * 1024 * 1024, False
    return 512, 512, 64 * 1024 * 1024, False


# -----------------------------------------------------------------------------
# Pallas kernel: one (batch, query-tile) accumulates over memory tiles (axis 2)
# -----------------------------------------------------------------------------
def _read_memory_kernel(lhs_ref, rhs_ref, mv_ref, out_ref, m_ref, l_ref,
                        *, compute_dtype):
    n_idx = pl.program_id(2)

    # ---- per (batch, L-tile) init: reset softmax stats + resident output ----
    @pl.when(n_idx == 0)
    def _():
        m_ref[...] = jnp.full(m_ref.shape, -jnp.inf, m_ref.dtype)
        l_ref[...] = jnp.zeros(l_ref.shape, l_ref.dtype)
        out_ref[0] = jnp.zeros(out_ref.shape[1:], out_ref.dtype)

    # ---- finished similarity tile: one fused bf16 matmul ---------------------
    # ms, b_sq, 1/sqrt(CK) and the N-padding mask are folded into the fused
    # contraction rows built in the wrapper; no per-step VPU fixup needed.
    sim = lax.dot_general(
        lhs_ref[0], rhs_ref[0],
        dimension_numbers=(((0,), (0,)), ((), ())),
        preferred_element_type=jnp.float32)                  # (n_tile, l_tile)

    # ---- online softmax over the memory axis ---------------------------------
    m_prev = m_ref[...]                                      # (1, Lt)
    m_new = jnp.maximum(m_prev, jnp.max(sim, axis=0, keepdims=True))
    alpha = jnp.exp(m_prev - m_new)                          # (1, Lt)
    p = jnp.exp(sim - m_new)                                 # (Nt, Lt) f32
    l_ref[...] = alpha * l_ref[...] + jnp.sum(p, axis=0, keepdims=True)
    m_ref[...] = m_new

    # ---- readout: accumulate directly into the resident f32 output block -----
    out_ref[0] = alpha * out_ref[0] + jnp.dot(
        mv_ref[0], p.astype(compute_dtype),
        preferred_element_type=jnp.float32)

    # ---- finalize: normalize once ---------------------------------------------
    @pl.when(n_idx == pl.num_programs(2) - 1)
    def _():
        out_ref[0] = out_ref[0] * pl.reciprocal(l_ref[...], approx=True)


# -----------------------------------------------------------------------------
# Wrapper (operand fusion / padding in plain JAX, hot loop in the kernel)
# -----------------------------------------------------------------------------
def read_memory_pallas(query_key, query_selection, memory_key,
                       memory_shrinkage, memory_value,
                       *, compute_dtype=jnp.bfloat16,
                       l_tile=None, n_tile=None):
    """
    query_key        : B x CK x H x W
    query_selection  : B x CK x H x W
    memory_key       : B x CK x T x H x W
    memory_shrinkage : B x 1  x T x H x W
    memory_value     : B x num_objects x CV x T x H x W
    returns          : B x num_objects x CV x H x W   (float32)
    """
    B, CK, H, W = query_key.shape
    T = memory_key.shape[2]
    num_objects, CV = memory_value.shape[1], memory_value.shape[2]
    N = T * H * W
    L = H * W
    CVtot = num_objects * CV
    scale = 1.0 / math.sqrt(CK)

    # Fused contraction rows: CK (a^2) + CK (2ab) + 1 (b_sq/ms) + 1 (pad mask),
    # zero-padded to a multiple of 16 for clean bf16 sublane packing.
    KF = _round_up(2 * CK + 2, 16)

    lt_def, nt_def, vmem_limit, two_cores = _pick_tiles()
    if l_tile is None:
        l_tile = lt_def
    if n_tile is None:
        n_tile = nt_def
    l_tile = min(l_tile, _round_up(L, 128))   # lane-dense output tiles
    n_tile = min(n_tile, _round_up(N, 128))

    # v7x: keep both TensorCores fed through the two "parallel" grid axes.
    if two_cores and L > 128 and B * _cdiv(_round_up(L, 128), l_tile) < 2:
        l_tile = min(l_tile, max(128, _round_up(_cdiv(L, 2), 128)))

    # Crude VMEM fit check: double-buffered bf16 inputs + resident f32 out block.
    def _footprint(lt, nt):
        return (2 * (KF * nt + KF * lt + CVtot * nt) * 2    # bf16 inputs, x2 bufs
                + 2 * CVtot * lt * 4                        # f32 out, x2 bufs
                + 4 * lt * 4)                               # m/l stats
    while _footprint(l_tile, n_tile) > int(0.75 * vmem_limit):
        if n_tile > 256:
            n_tile = max(256, _round_up(n_tile // 2, 128))
        elif l_tile > 256:
            l_tile = max(256, _round_up(l_tile // 2, 128))
        else:
            break

    L_pad = _round_up(L, l_tile)
    N_pad = _round_up(N, n_tile)

    f32 = jnp.float32
    qk = query_key.reshape(B, CK, L).astype(f32)
    qe = query_selection.reshape(B, CK, L).astype(f32)
    mk = memory_key.reshape(B, CK, N).astype(f32)
    ms = memory_shrinkage.reshape(B, 1, N).astype(f32)
    mv = memory_value.reshape(B, CVtot, N).astype(compute_dtype)

    # ---- fused memory-side lhs: [-mk^2*ms ; 2*mk*ms ; -ms ; pad ; 0...] -------
    lhs = jnp.concatenate([-(mk * mk) * ms, 2.0 * mk * ms, -ms], axis=1)
    if N_pad > N:
        lhs = jnp.pad(lhs, ((0, 0), (0, 0), (0, N_pad - N)))
    pad_row = (jnp.arange(N_pad) >= N).astype(f32)[None, None, :]
    pad_row = jnp.broadcast_to(pad_row, (B, 1, N_pad))
    lhs = jnp.concatenate([lhs, pad_row], axis=1)            # (B, 2CK+2, N_pad)
    if KF > 2 * CK + 2:
        lhs = jnp.pad(lhs, ((0, 0), (0, KF - (2 * CK + 2)), (0, 0)))
    lhs = lhs.astype(compute_dtype)

    # ---- fused query-side rhs: [qe ; qk*qe ; b_sq ; -BIG ; 0...] * scale ------
    qkqe = qk * qe
    b_sq = jnp.sum(qkqe * qk, axis=1, keepdims=True)         # (B, 1, L)
    rhs = jnp.concatenate([qe * scale, qkqe * scale, b_sq * scale], axis=1)
    if L_pad > L:
        rhs = jnp.pad(rhs, ((0, 0), (0, 0), (0, L_pad - L)))
    neg_row = jnp.full((B, 1, L_pad), -1e9, f32)             # pairs with pad_row
    rhs = jnp.concatenate([rhs, neg_row], axis=1)            # (B, 2CK+2, L_pad)
    if KF > 2 * CK + 2:
        rhs = jnp.pad(rhs, ((0, 0), (0, KF - (2 * CK + 2)), (0, 0)))
    rhs = rhs.astype(compute_dtype)

    if N_pad > N:
        mv = jnp.pad(mv, ((0, 0), (0, 0), (0, N_pad - N)))

    grid = (B, L_pad // l_tile, N_pad // n_tile)
    n_l_tiles = L_pad // l_tile

    # Advisory cost estimate so XLA overlaps the wrapper prep with the kernel.
    flops = 2 * B * L_pad * N_pad * (KF + CVtot)
    transcendentals = B * L_pad * (N_pad + N_pad // n_tile)
    bytes_accessed = (n_l_tiles * B * (KF + CVtot) * N_pad * 2   # lhs+mv re-streamed/L-tile
                      + B * KF * L_pad * 2                       # rhs
                      + B * CVtot * L_pad * 4)                   # output

    kernel = functools.partial(_read_memory_kernel, compute_dtype=compute_dtype)

    out = pl.pallas_call(
        kernel,
        out_shape=jax.ShapeDtypeStruct((B, CVtot, L_pad), jnp.float32),
        grid_spec=pltpu.PrefetchScalarGridSpec(
            num_scalar_prefetch=0,
            grid=grid,
            in_specs=[
                pl.BlockSpec((1, KF, n_tile), lambda b, l, n: (b, 0, n)),    # lhs
                pl.BlockSpec((1, KF, l_tile), lambda b, l, n: (b, 0, l)),    # rhs
                pl.BlockSpec((1, CVtot, n_tile), lambda b, l, n: (b, 0, n)), # mv
            ],
            out_specs=pl.BlockSpec((1, CVtot, l_tile), lambda b, l, n: (b, 0, l)),
            scratch_shapes=[
                pltpu.VMEM((1, l_tile), f32),                 # running max
                pltpu.VMEM((1, l_tile), f32),                 # running sum
            ],
        ),
        compiler_params=pltpu.CompilerParams(
            dimension_semantics=("parallel", "parallel", "arbitrary"),
            vmem_limit_bytes=vmem_limit,
        ),
        cost_estimate=pl.CostEstimate(flops=int(flops),
                                      transcendentals=int(transcendentals),
                                      bytes_accessed=int(bytes_accessed)),
    )(lhs, rhs, mv)

    if L_pad > L:
        out = out[:, :, :L]
    return out.reshape(B, num_objects, CV, H, W)


# Pure-JAX f32 reference (mirrors XMem's get_affinity + readout) for validation.
def read_memory_ref(query_key, query_selection, memory_key,
                    memory_shrinkage, memory_value):
    B, CK, H, W = query_key.shape
    T = memory_key.shape[2]
    num_objects, CV = memory_value.shape[1], memory_value.shape[2]
    N, L = T * H * W, H * W

    qk = query_key.reshape(B, CK, L)
    qe = query_selection.reshape(B, CK, L)
    mk = memory_key.reshape(B, CK, N)
    ms = memory_shrinkage.reshape(B, N, 1)
    mv = memory_value.reshape(B, num_objects * CV, N)

    mk_t = jnp.transpose(mk, (0, 2, 1))
    a_sq = jnp.einsum('bnc,bcl->bnl', mk_t ** 2, qe)
    two_ab = 2.0 * jnp.einsum('bnc,bcl->bnl', mk_t, qk * qe)
    b_sq = jnp.sum(qe * qk ** 2, axis=1, keepdims=True)
    sim = (-a_sq + two_ab - b_sq) * ms / math.sqrt(CK)
    aff = jax.nn.softmax(sim, axis=1)
    mem = jnp.einsum('bvn,bnl->bvl', mv, aff)
    return mem.reshape(B, num_objects, CV, H, W)


class XMemPallas:
    """Mode-dispatching forward, mirroring XMem.forward. Only the memory-read
    hot path is backed by a Pallas kernel."""

    def __init__(self, config):
        self.key_dim = config.get('key_dim', 64)
        self.value_dim = config.get('value_dim', 512)
        self.hidden_dim = config.get('hidden_dim', 64)

    def forward(self, mode, *args, **kwargs):
        if mode == 'read_memory':
            return read_memory_pallas(*args, **kwargs)
        # TODO(synk): encode_key/encode_value/segment/encode_flow/encode_text/
        # fuse_value require ResNet backbones / decoder / CLIP and are not
        # implemented as Pallas kernels here.
        raise NotImplementedError(mode)


if __name__ == "__main__":
    # Small shapes consistent with the module's read_memory signature.
    B, CK, CV, num_objects, T, H, W = 2, 16, 32, 2, 3, 16, 16
    config = {'key_dim': CK, 'value_dim': CV, 'hidden_dim': 16}
    model = XMemPallas(config)

    key = jax.random.PRNGKey(0)
    k1, k2, k3, k4, k5 = jax.random.split(key, 5)
    query_key = jax.random.normal(k1, (B, CK, H, W), jnp.float32)
    query_selection = jax.nn.sigmoid(
        jax.random.normal(k2, (B, CK, H, W), jnp.float32))
    memory_key = jax.random.normal(k3, (B, CK, T, H, W), jnp.float32)
    memory_shrinkage = 1.0 + jax.nn.softplus(
        jax.random.normal(k4, (B, 1, T, H, W), jnp.float32))
    memory_value = jax.random.normal(
        k5, (B, num_objects, CV, T, H, W), jnp.float32)

    ref = read_memory_ref(query_key, query_selection, memory_key,
                          memory_shrinkage, memory_value)

    # Default (generation-aware) tiling.
    out = model.forward('read_memory', query_key, query_selection,
                        memory_key, memory_shrinkage, memory_value)
    out = jax.block_until_ready(out)
    assert out.shape == (B, num_objects, CV, H, W)
    assert jnp.allclose(out, ref, atol=3e-2, rtol=3e-2), "mismatch vs reference"

    # Explicit small tiles: exercises multi-tile online-softmax reduction over N
    # and multiple query (L) tiles.
    out_small = read_memory_pallas(query_key, query_selection, memory_key,
                                   memory_shrinkage, memory_value,
                                   l_tile=128, n_tile=128)
    out_small = jax.block_until_ready(out_small)
    assert jnp.allclose(out_small, ref, atol=3e-2, rtol=3e-2), \
        "mismatch vs reference (small tiles)"

    # Tiles that force memory-axis padding (N=768 -> N_pad=1024): exercises the
    # fused padding-mask row in the similarity matmul.
    out_padn = read_memory_pallas(query_key, query_selection, memory_key,
                                  memory_shrinkage, memory_value,
                                  l_tile=128, n_tile=512)
    out_padn = jax.block_until_ready(out_padn)
    assert jnp.allclose(out_padn, ref, atol=3e-2, rtol=3e-2), \
        "mismatch vs reference (padded N tiles)"

    # Non-multiple-of-128 spatial size: exercises both L and N padding with the
    # default tiling on any device generation.
    B2, T2, H2, W2, no2 = 1, 2, 10, 14, 1
    kk = jax.random.split(jax.random.PRNGKey(0), 5)
    qk2 = jax.random.normal(kk[0], (B2, CK, H2, W2), jnp.float32)
    qe2 = jax.nn.sigmoid(jax.random.normal(kk[1], (B2, CK, H2, W2), jnp.float32))
    mk2 = jax.random.normal(kk[2], (B2, CK, T2, H2, W2), jnp.float32)
    ms2 = 1.0 + jax.nn.softplus(
        jax.random.normal(kk[3], (B2, 1, T2, H2, W2), jnp.float32))
    mv2 = jax.random.normal(kk[4], (B2, no2, CV, T2, H2, W2), jnp.float32)
    ref2 = read_memory_ref(qk2, qe2, mk2, ms2, mv2)
    out2 = jax.block_until_ready(read_memory_pallas(qk2, qe2, mk2, ms2, mv2))
    assert out2.shape == (B2, no2, CV, H2, W2)
    assert jnp.allclose(out2, ref2, atol=3e-2, rtol=3e-2), \
        "mismatch vs reference (odd spatial size)"

    print("KERNEL_OK")
</pallas_src>

<mosaic_0001>
module attributes {stable_mosaic.version = 11 : i64} {
  func.func @_read_memory_kernel(%arg0: i32, %arg1: i32, %arg2: i32, %arg3: memref<1x48x512xbf16, #tpu.memory_space<vmem>>, %arg4: memref<1x48x256xbf16, #tpu.memory_space<vmem>>, %arg5: memref<1x64x512xbf16, #tpu.memory_space<vmem>>, %arg6: memref<1x64x256xf32, #tpu.memory_space<vmem>>, %arg7: memref<1x256xf32, #tpu.memory_space<vmem>>, %arg8: memref<1x256xf32, #tpu.memory_space<vmem>>) attributes {dimension_semantics = [#tpu.dimension_semantics<parallel>, #tpu.dimension_semantics<parallel>, #tpu.dimension_semantics<arbitrary>], iteration_bounds = array<i64: 2, 1, 2>, scalar_prefetch = 0 : i64, scratch_operands = 2 : i64, tpu.core_type = #tpu.core_type<tc>, window_params = [{transform_indices = @transform_0, window_bounds = array<i64: 1, 48, 512>}, {transform_indices = @transform_1, window_bounds = array<i64: 1, 48, 256>}, {transform_indices = @transform_2, window_bounds = array<i64: 1, 64, 512>}, {transform_indices = @transform_3, window_bounds = array<i64: 1, 64, 256>}]} {
    %c0_i32 = arith.constant 0 : i32
    %0 = arith.cmpi eq, %arg2, %c0_i32 : i32
    %1 = arith.extui %0 : i1 to i32
    %c0_i32_0 = arith.constant 0 : i32
    %2 = arith.cmpi ne, %1, %c0_i32_0 : i32
    scf.if %2 {
      %cst_27 = arith.constant 0xFF800000 : f32
      %39 = vector.broadcast %cst_27 : f32 to vector<1x256xf32>
      %c0_28 = arith.constant 0 : index
      %c0_29 = arith.constant 0 : index
      %40 = vector.load %arg7[%c0_28, %c0_29] : memref<1x256xf32, #tpu.memory_space<vmem>>, vector<1x256xf32>
      tpu.vector_store %arg7[%c0_28, %c0_29], %39 {strides = array<i32>} : memref<1x256xf32, #tpu.memory_space<vmem>>, vector<1x256xf32>,
      %cst_30 = arith.constant 0.000000e+00 : f32
      %41 = vector.broadcast %cst_30 : f32 to vector<1x256xf32>
      %c0_31 = arith.constant 0 : index
      %c0_32 = arith.constant 0 : index
      %42 = vector.load %arg8[%c0_31, %c0_32] : memref<1x256xf32, #tpu.memory_space<vmem>>, vector<1x256xf32>
      tpu.vector_store %arg8[%c0_31, %c0_32], %41 {strides = array<i32>} : memref<1x256xf32, #tpu.memory_space<vmem>>, vector<1x256xf32>,
      %cst_33 = arith.constant 0.000000e+00 : f32
      %43 = vector.broadcast %cst_33 : f32 to vector<64x256xf32>
      %c0_34 = arith.constant 0 : index
      %c0_35 = arith.constant 0 : index
      %c0_36 = arith.constant 0 : index
      %44 = vector.load %arg6[%c0_34, %c0_35, %c0_36] : memref<1x64x256xf32, #tpu.memory_space<vmem>>, vector<1x64x256xf32>
      %45 = vector.shape_cast %44 : vector<1x64x256xf32> to vector<64x256xf32>
      %46 = vector.shape_cast %43 : vector<64x256xf32> to vector<1x64x256xf32>
      tpu.vector_store %arg6[%c0_34, %c0_35, %c0_36], %46 {strides = array<i32>} : memref<1x64x256xf32, #tpu.memory_space<vmem>>, vector<1x64x256xf32>,
    } else {
    }
    %c0 = arith.constant 0 : index
    %c0_1 = arith.constant 0 : index
    %c0_2 = arith.constant 0 : index
    %3 = vector.load %arg3[%c0, %c0_1, %c0_2] : memref<1x48x512xbf16, #tpu.memory_space<vmem>>, vector<1x48x512xbf16>
    %4 = vector.shape_cast %3 : vector<1x48x512xbf16> to vector<48x512xbf16>
    %c0_3 = arith.constant 0 : index
    %c0_4 = arith.constant 0 : index
    %c0_5 = arith.constant 0 : index
    %5 = vector.load %arg4[%c0_3, %c0_4, %c0_5] : memref<1x48x256xbf16, #tpu.memory_space<vmem>>, vector<1x48x256xbf16>
    %6 = vector.shape_cast %5 : vector<1x48x256xbf16> to vector<48x256xbf16>
    %cst = arith.constant dense<0.000000e+00> : vector<512x256xf32>
    %7 = tpu.matmul %4, %6, %cst {dimension_numbers = #tpu.dot_dimension_numbers<[0], [0], [1], [1], [0, 1, 1, 1], [], []>} : vector<48x512xbf16>, vector<48x256xbf16>, vector<512x256xf32> -> vector<512x256xf32>
    %c0_6 = arith.constant 0 : index
    %c0_7 = arith.constant 0 : index
    %8 = vector.load %arg7[%c0_6, %c0_7] : memref<1x256xf32, #tpu.memory_space<vmem>>, vector<1x256xf32>
    %cst_8 = arith.constant dense<0xFF800000> : vector<256xf32>
    %9 = vector.multi_reduction <maximumf>, %7, %cst_8 [0] : vector<512x256xf32> to vector<256xf32>
    %10 = vector.shape_cast %9 : vector<256xf32> to vector<1x256xf32>
    %11 = arith.maximumf %8, %10 : vector<1x256xf32>
    %12 = arith.subf %8, %11 : vector<1x256xf32>
    %13 = math.exp %12 : vector<1x256xf32>
    %14 = vector.broadcast %11 : vector<1x256xf32> to vector<512x256xf32>
    %15 = arith.subf %7, %14 : vector<512x256xf32>
    %16 = math.exp %15 : vector<512x256xf32>
    %c0_9 = arith.constant 0 : index
    %c0_10 = arith.constant 0 : index
    %17 = vector.load %arg8[%c0_9, %c0_10] : memref<1x256xf32, #tpu.memory_space<vmem>>, vector<1x256xf32>
    %18 = arith.mulf %13, %17 : vector<1x256xf32>
    %cst_11 = arith.constant dense<0.000000e+00> : vector<256xf32>
    %19 = vector.multi_reduction <add>, %16, %cst_11 [0] : vector<512x256xf32> to vector<256xf32>
    %20 = vector.shape_cast %19 : vector<256xf32> to vector<1x256xf32>
    %21 = arith.addf %18, %20 : vector<1x256xf32>
    %c0_12 = arith.constant 0 : index
    %c0_13 = arith.constant 0 : index
    %22 = vector.load %arg8[%c0_12, %c0_13] : memref<1x256xf32, #tpu.memory_space<vmem>>, vector<1x256xf32>
    tpu.vector_store %arg8[%c0_12, %c0_13], %21 {strides = array<i32>} : memref<1x256xf32, #tpu.memory_space<vmem>>, vector<1x256xf32>,
    %c0_14 = arith.constant 0 : index
    %c0_15 = arith.constant 0 : index
    %23 = vector.load %arg7[%c0_14, %c0_15] : memref<1x256xf32, #tpu.memory_space<vmem>>, vector<1x256xf32>
    tpu.vector_store %arg7[%c0_14, %c0_15], %11 {strides = array<i32>} : memref<1x256xf32, #tpu.memory_space<vmem>>, vector<1x256xf32>,
    %c0_16 = arith.constant 0 : index
    %c0_17 = arith.constant 0 : index
    %c0_18 = arith.constant 0 : index
    %24 = vector.load %arg6[%c0_16, %c0_17, %c0_18] : memref<1x64x256xf32, #tpu.memory_space<vmem>>, vector<1x64x256xf32>
    %25 = vector.shape_cast %24 : vector<1x64x256xf32> to vector<64x256xf32>
    %26 = vector.broadcast %13 : vector<1x256xf32> to vector<64x256xf32>
    %27 = arith.mulf %26, %25 : vector<64x256xf32>
    %c0_19 = arith.constant 0 : index
    %c0_20 = arith.constant 0 : index
    %c0_21 = arith.constant 0 : index
    %28 = vector.load %arg5[%c0_19, %c0_20, %c0_21] : memref<1x64x512xbf16, #tpu.memory_space<vmem>>, vector<1x64x512xbf16>
    %29 = vector.shape_cast %28 : vector<1x64x512xbf16> to vector<64x512xbf16>
    %30 = arith.truncf %16 : vector<512x256xf32> to vector<512x256xbf16>
    %cst_22 = arith.constant dense<0.000000e+00> : vector<64x256xf32>
    %31 = tpu.matmul %29, %30, %cst_22 {dimension_numbers = #tpu.dot_dimension_numbers<[1], [0], [0], [1], [0, 0, 1, 1], [], []>} : vector<64x512xbf16>, vector<512x256xbf16>, vector<64x256xf32> -> vector<64x256xf32>
    %32 = arith.addf %27, %31 : vector<64x256xf32>
    %c0_23 = arith.constant 0 : index
    %c0_24 = arith.constant 0 : index
    %c0_25 = arith.constant 0 : index
    %33 = vector.load %arg6[%c0_23, %c0_24, %c0_25] : memref<1x64x256xf32, #tpu.memory_space<vmem>>, vector<1x64x256xf32>
    %34 = vector.shape_cast %33 : vector<1x64x256xf32> to vector<64x256xf32>
    %35 = vector.shape_cast %32 : vector<64x256xf32> to vector<1x64x256xf32>
    tpu.vector_store %arg6[%c0_23, %c0_24, %c0_25], %35 {strides = array<i32>} : memref<1x64x256xf32, #tpu.memory_space<vmem>>, vector<1x64x256xf32>,
    %c1_i32 = arith.constant 1 : i32
    %36 = arith.cmpi eq, %arg2, %c1_i32 : i32
    %37 = arith.extui %36 : i1 to i32
    %c0_i32_26 = arith.constant 0 : i32
    %38 = arith.cmpi ne, %37, %c0_i32_26 : i32
    scf.if %38 {
      %c0_27 = arith.constant 0 : index
      %c0_28 = arith.constant 0 : index
      %c0_29 = arith.constant 0 : index
      %39 = vector.load %arg6[%c0_27, %c0_28, %c0_29] : memref<1x64x256xf32, #tpu.memory_space<vmem>>, vector<1x64x256xf32>
      %40 = vector.shape_cast %39 : vector<1x64x256xf32> to vector<64x256xf32>
      %c0_30 = arith.constant 0 : index
      %c0_31 = arith.constant 0 : index
      %41 = vector.load %arg8[%c0_30, %c0_31] : memref<1x256xf32, #tpu.memory_space<vmem>>, vector<1x256xf32>
      %42 = tpu.reciprocal %41 {approx = true} : vector<1x256xf32> -> vector<1x256xf32>
      %43 = vector.broadcast %42 : vector<1x256xf32> to vector<64x256xf32>
      %44 = arith.mulf %40, %43 : vector<64x256xf32>
      %c0_32 = arith.constant 0 : index
      %c0_33 = arith.constant 0 : index
      %c0_34 = arith.constant 0 : index
      %45 = vector.load %arg6[%c0_32, %c0_33, %c0_34] : memref<1x64x256xf32, #tpu.memory_space<vmem>>, vector<1x64x256xf32>
      %46 = vector.shape_cast %45 : vector<1x64x256xf32> to vector<64x256xf32>
      %47 = vector.shape_cast %44 : vector<64x256xf32> to vector<1x64x256xf32>
      tpu.vector_store %arg6[%c0_32, %c0_33, %c0_34], %47 {strides = array<i32>} : memref<1x64x256xf32, #tpu.memory_space<vmem>>, vector<1x64x256xf32>,
    } else {
    }
    return
  }
  func.func @transform_0(%arg0: i32, %arg1: i32, %arg2: i32) -> (i32, i32, i32) {
    %c0_i32 = arith.constant 0 : i32
    %c0_i32_0 = arith.constant 0 : i32
    return %arg0, %c0_i32, %arg2 : i32, i32, i32
  }
  func.func @transform_1(%arg0: i32, %arg1: i32, %arg2: i32) -> (i32, i32, i32) {
    %c0_i32 = arith.constant 0 : i32
    %c0_i32_0 = arith.constant 0 : i32
    return %arg0, %c0_i32, %arg1 : i32, i32, i32
  }
  func.func @transform_2(%arg0: i32, %arg1: i32, %arg2: i32) -> (i32, i32, i32) {
    %c0_i32 = arith.constant 0 : i32
    %c0_i32_0 = arith.constant 0 : i32
    return %arg0, %c0_i32, %arg2 : i32, i32, i32
  }
  func.func @transform_3(%arg0: i32, %arg1: i32, %arg2: i32) -> (i32, i32, i32) {
    %c0_i32 = arith.constant 0 : i32
    %c0_i32_0 = arith.constant 0 : i32
    return %arg0, %c0_i32, %arg1 : i32, i32, i32
  }
}

</mosaic_0001>

<llo_original>
// kernel: tpu_custom_call.1
$region0: #{tpu_custom_call.1}
  #allocation0 [shape = 'u32[]', space=smem, size = 0x4, offset = 0x4, fixed_abs, tag = 'smem constant byte address 0x4 - core index']
  #allocation1 [shape = 'u32[144,128]{1,0:T(1,128)}', space=vmem, size = 0x12000, scoped, tag = 'internal scratch']
  #allocation2 [shape = 'f32[1,256]{1,0:T(1,128)}', space=vmem, size = 0x400, scoped, tag = 'scratch operand']
  #allocation3 [shape = 'f32[1,256]{1,0:T(1,128)}', space=vmem, size = 0x400, scoped, tag = 'scratch operand']
  %s0 = inlined_call_operand.hbm [shape: bf16[2,48,1024], index: 0, kind: input, shape index: {}]
  %s1 = inlined_call_operand.hbm [shape: bf16[2,48,256], index: 1, kind: input, shape index: {}]
  %s2 = inlined_call_operand.hbm [shape: bf16[2,64,1024], index: 2, kind: input, shape index: {}]
  %s3 = inlined_call_operand.hbm [shape: f32[2,64,256], index: 3, kind: output, shape index: {}]
  %s4 = sld [smem:[#allocation0]]
  $region65: #{tpu_custom_call.1} parent=0
    _
  %s6 = ssub.s32 1, %s4
  %s7 = scalar_select 0, %s6, %s4
  $region1: #{tpu_custom_call.1} parent=0
    #allocation4 [shape = 'u8[98304]{0}', space=vmem, size = 0x18000, scoped, tag = 'input window, operand 0']
    #allocation5 [shape = 's32[2]{0}', space=sflag, size = 0x8, scoped, tag = 'scoped memory for tpu_custom_call.1']
    #allocation6 [shape = 's32[2]{0}', space=sflag, size = 0x8, scoped, tag = 'scoped memory for tpu_custom_call.1']
    #allocation7 [shape = 'u8[49152]{0}', space=vmem, size = 0xc000, scoped, tag = 'input window, operand 1']
    #allocation8 [shape = 's32[2]{0}', space=sflag, size = 0x8, scoped, tag = 'scoped memory for tpu_custom_call.1']
    #allocation9 [shape = 'u8[131072]{0}', space=vmem, size = 0x20000, scoped, tag = 'input window, operand 2']
    #allocation10 [shape = 'u8[131072]{0}', space=vmem, size = 0x20000, scoped, tag = 'output window, operand 0']
    %8 = vsyncpa [#allocation5], 0
    %s9 = scalar_lea.sflag [#allocation5], 1
    %10 = vsyncpa %s9, 0
    %11 = vsyncpa [#allocation8], 0
    %s12 = scalar_lea.sflag [#allocation8], 1
    %13 = vsyncpa %s12, 0
    %14 = vsyncpa [#allocation6], 0
    %s15 = scalar_lea.sflag [#allocation6], 1
    %16 = vsyncpa %s15, 0
    loop: start=0, step=1, limit=6
    $region2: #{tpu_custom_call.1} parent=1 // loop_pre_header
      _
    $region3: #{tpu_custom_call.1} parent=1 // loop_header
      %s18 = sphi 0, %s22
      %p19 = scmp.ge.s32.totalorder %s18, 6
      %s25 = sphi 0, %s44
      %s26 = sphi 0, %s40
      %s27 = sphi 0, %s36
      %s28 = sphi 0, %s25
      %s29 = sphi 0, %s26
      %s30 = sphi 0, %s27
      %s31 = sphi 0, %s28
      %s32 = sphi 0, %s29
      %s33 = sphi 0, %s30
      %s49 = sphi 0, %s51
      %s52 = sphi 0, %s49
      %s53 = sphi 0, %s52
      %s69 = sphi 0, %s53
      %s77 = sphi 0, %s79
      %s80 = sphi 0, %s77
      %s81 = sphi 0, %s80
      %s97 = sphi 0, %s81
      %s105 = sphi 0, %s107
      %s108 = sphi 0, %s105
      %s109 = sphi 0, %s108
      %s125 = sphi 0, %s109
      %s133 = sphi 0, %s135
      %s136 = sphi 0, %s133
      %s137 = sphi 0, %s136
      %s153 = sphi 0, %s137
    $region4: #{tpu_custom_call.1} parent=1 // loop_header_branch
      %21 = sbr.rel (%p19) target = $region8
    $region5: #{tpu_custom_call.1} parent=1 // loop_body
      %s23 = ssub.s32 %s18, 1
      %s24 = ssub.s32 %s18, 2
      %s34 = sadd.s32 1, %s27
      %p35 = scmp.ge.s32.totalorder %s34, 2
      %s36 = scalar_select %p35, 0, %s34
      %s37 = sadd.s32 1, %s26
      %s38 = scalar_select %p35, %s37, %s26
      %p39 = scmp.ge.s32.totalorder %s38, 1
      %s40 = scalar_select %p39, 0, %s38
      %s41 = sadd.s32 1, %s25
      %s42 = scalar_select %p39, %s41, %s25
      %p43 = scmp.ge.s32.totalorder %s42, 2
      %s44 = scalar_select %p43, 0, %s42
      %s45 = ssub.s32 %s25, %s44
      %s46 = ssub.s32 %s27, %s36
      %s47 = sor.u32 %s45, %s46
      %p48 = scmp.eq.s32.totalorder %s47, 0
      %s50 = sadd.s32 %s49, 1
      %s51 = scalar_select %p48, %s49, %s50
      %p54 = pneg %p48
      %p55 = scmp.eq.s32.totalorder %s18, 3
      %p56 = por %p54, %p55
      %p57 = scmp.ne.s32.totalorder %s49, %s52
      %p58 = scmp.eq.s32.totalorder %s18, 0
      %p59 = por %p57, %p58
      %p60 = scmp.ne.s32.totalorder %s49, %s52
      %p61 = scmp.eq.s32.totalorder %s23, 3
      %p62 = por %p60, %p61
      %p63 = scmp.ne.s32.totalorder %s52, %s53
      %p64 = scmp.eq.s32.totalorder %s23, 0
      %p65 = por %p63, %p64
      %p66 = scmp.ne.s32.totalorder %s52, %s53
      %p67 = scmp.eq.s32.totalorder %s24, 3
      %p68 = por %p66, %p67
      %p70 = scmp.ne.s32.totalorder %s53, %s69
      %p71 = scmp.eq.s32.totalorder %s24, 0
      %p72 = por %p70, %p71
      %s73 = ssub.s32 %s25, %s44
      %s74 = ssub.s32 %s26, %s40
      %s75 = sor.u32 %s73, %s74
      %p76 = scmp.eq.s32.totalorder %s75, 0
      %s78 = sadd.s32 %s77, 1
      %s79 = scalar_select %p76, %s77, %s78
      %p82 = pneg %p76
      %p83 = scmp.eq.s32.totalorder %s18, 3
      %p84 = por %p82, %p83
      %p85 = scmp.ne.s32.totalorder %s77, %s80
      %p86 = scmp.eq.s32.totalorder %s18, 0
      %p87 = por %p85, %p86
      %p88 = scmp.ne.s32.totalorder %s77, %s80
      %p89 = scmp.eq.s32.totalorder %s23, 3
      %p90 = por %p88, %p89
      %p91 = scmp.ne.s32.totalorder %s80, %s81
      %p92 = scmp.eq.s32.totalorder %s23, 0
      %p93 = por %p91, %p92
      %p94 = scmp.ne.s32.totalorder %s80, %s81
      %p95 = scmp.eq.s32.totalorder %s24, 3
      %p96 = por %p94, %p95
      %p98 = scmp.ne.s32.totalorder %s81, %s97
      %p99 = scmp.eq.s32.totalorder %s24, 0
      %p100 = por %p98, %p99
      %s101 = ssub.s32 %s25, %s44
      %s102 = ssub.s32 %s27, %s36
      %s103 = sor.u32 %s101, %s102
      %p104 = scmp.eq.s32.totalorder %s103, 0
      %s106 = sadd.s32 %s105, 1
      %s107 = scalar_select %p104, %s105, %s106
      %p110 = pneg %p104
      %p111 = scmp.eq.s32.totalorder %s18, 3
      %p112 = por %p110, %p111
      %p113 = scmp.ne.s32.totalorder %s105, %s108
      %p114 = scmp.eq.s32.totalorder %s18, 0
      %p115 = por %p113, %p114
      %p116 = scmp.ne.s32.totalorder %s105, %s108
      %p117 = scmp.eq.s32.totalorder %s23, 3
      %p118 = por %p116, %p117
      %p119 = scmp.ne.s32.totalorder %s108, %s109
      %p120 = scmp.eq.s32.totalorder %s23, 0
      %p121 = por %p119, %p120
      %p122 = scmp.ne.s32.totalorder %s108, %s109
      %p123 = scmp.eq.s32.totalorder %s24, 3
      %p124 = por %p122, %p123
      %p126 = scmp.ne.s32.totalorder %s109, %s125
      %p127 = scmp.eq.s32.totalorder %s24, 0
      %p128 = por %p126, %p127
      %s129 = ssub.s32 %s25, %s44
      %s130 = ssub.s32 %s26, %s40
      %s131 = sor.u32 %s129, %s130
      %p132 = scmp.eq.s32.totalorder %s131, 0
      %s134 = sadd.s32 %s133, 1
      %s135 = scalar_select %p132, %s133, %s134
      %p138 = pneg %p132
      %p139 = scmp.eq.s32.totalorder %s18, 3
      %p140 = por %p138, %p139
      %p141 = scmp.ne.s32.totalorder %s133, %s136
      %p142 = scmp.eq.s32.totalorder %s18, 0
      %p143 = por %p141, %p142
      %p144 = scmp.ne.s32.totalorder %s133, %s136
      %p145 = scmp.eq.s32.totalorder %s23, 3
      %p146 = por %p144, %p145
      %p147 = scmp.ne.s32.totalorder %s136, %s137
      %p148 = scmp.eq.s32.totalorder %s23, 0
      %p149 = por %p147, %p148
      %p150 = scmp.ne.s32.totalorder %s136, %s137
      %p151 = scmp.eq.s32.totalorder %s24, 3
      %p152 = por %p150, %p151
      %p154 = scmp.ne.s32.totalorder %s137, %s153
      %p155 = scmp.eq.s32.totalorder %s24, 0
      %p156 = por %p154, %p155
      %p157 = scmp.le.s32.totalorder 1, %s18
      %p158 = scmp.lt.s32.totalorder %s18, 5
      %p159 = pnand %p157, %p158
      %p160 = pneg %p159
      // Predicated region
      $region9: #{tpu_custom_call.1} parent=5 // pred_check
        _
      $region10: #{tpu_custom_call.1} parent=5 // pred_check_branch
        %162 = sbr.rel (%p159) target = $region12
      $region11: #{tpu_custom_call.1} parent=5 // pred_region
        %s163 = ssub.s32 %s18, 1
      $region12: #{tpu_custom_call.1} parent=5 // pred_fallthru
        _
      %p164 = scmp.lt.s32.totalorder %s18, 4
      // Predicated region
      $region13: #{tpu_custom_call.1} parent=5 // pred_check
        %p165 = pneg %p164
      $region14: #{tpu_custom_call.1} parent=5 // pred_check_branch
        %167 = sbr.rel (%p165) target = $region16
      $region15: #{tpu_custom_call.1} parent=5 // pred_region
        // Predicated region
        $region17: #{tpu_custom_call.1} parent=15 // pred_check
          %p168 = pneg %p59
        $region18: #{tpu_custom_call.1} parent=15 // pred_check_branch
          %170 = sbr.rel (%p168) target = $region20
        $region19: #{tpu_custom_call.1} parent=15 // pred_region
          %s171 = sand.u32 %s49, 1
          %s172 = scalar_lea.sflag [#allocation5], %s171
          %s173 = sand.u32 %s49, 1
          %s174 = smul.addr %s173, 96
          %s175 = scalar_lea.vmem [#allocation4], %s174
          %s176 = smul.u32 4, %s27
          %s178 = ssub.s32 1536, 1536
          %179 = vsyncadd %s172, %s178
          %s180 = smul.addr %s25, 48
          %s181 = sadd.s32 %s176, %s180
          %s182 = smul.addr %s181, 64
          %s183 = scalar_lea.hbm %s0, %s182
          %s184 = sshll.u32 %s175, 4
          %s185 = int_to_ptr.vmem [resolvable:$true] %s184
          %190 = dma.hbm_to_vmem [thread:$0]  %s183, 1536, %s185, %s172, 512, 256, 16
        $region20: #{tpu_custom_call.1} parent=15 // pred_fallthru
          _
        // Predicated region
        $region21: #{tpu_custom_call.1} parent=15 // pred_check
          %p191 = pneg %p87
        $region22: #{tpu_custom_call.1} parent=15 // pred_check_branch
          %193 = sbr.rel (%p191) target = $region24
        $region23: #{tpu_custom_call.1} parent=15 // pred_region
          %s194 = sand.u32 %s18, 1
          %s195 = scalar_lea.sflag [#allocation8], %s194
          %s196 = sand.u32 %s77, 1
          %s197 = smul.addr %s196, 48
          %s198 = scalar_lea.vmem [#allocation7], %s197
          %s199 = smul.u32 2, %s26
          %s201 = ssub.s32 768, 768
          %202 = vsyncadd %s195, %s201
          %s203 = smul.addr %s25, 12
          %s204 = sadd.s32 %s199, %s203
          %s205 = smul.addr %s204, 64
          %s206 = scalar_lea.hbm %s1, %s205
          %s207 = sshll.u32 %s198, 4
          %s208 = int_to_ptr.vmem [resolvable:$true] %s207
          %213 = dma.hbm_to_vmem [thread:$0]  %s206, 768, %s208, %s195, 128, 128, 8
        $region24: #{tpu_custom_call.1} parent=15 // pred_fallthru
          _
        // Predicated region
        $region25: #{tpu_custom_call.1} parent=15 // pred_check
          %p214 = pneg %p115
        $region26: #{tpu_custom_call.1} parent=15 // pred_check_branch
          %216 = sbr.rel (%p214) target = $region28
        $region27: #{tpu_custom_call.1} parent=15 // pred_region
          %s217 = sand.u32 %s18, 1
          %s218 = scalar_lea.sflag [#allocation8], %s217
          %s219 = sand.u32 %s105, 1
          %s220 = smul.addr %s219, 128
          %s221 = scalar_lea.vmem [#allocation9], %s220
          %s222 = smul.u32 4, %s27
          %s224 = ssub.s32 2048, 2048
          %225 = vsyncadd %s218, %s224
          %s226 = smul.addr %s25, 64
          %s227 = sadd.s32 %s222, %s226
          %s228 = smul.addr %s227, 64
          %s229 = scalar_lea.hbm %s2, %s228
          %s230 = sshll.u32 %s221, 4
          %s231 = int_to_ptr.vmem [resolvable:$true] %s230
          %236 = dma.hbm_to_vmem [thread:$0]  %s229, 2048, %s231, %s218, 512, 256, 16
        $region28: #{tpu_custom_call.1} parent=15 // pred_fallthru
          _
      $region16: #{tpu_custom_call.1} parent=5 // pred_fallthru
        _
      %p237 = scmp.le.s32.totalorder 1, %s18
      %p238 = scmp.lt.s32.totalorder %s18, 5
      %p239 = pnand %p237, %p238
      %p240 = pneg %p239
      // Predicated region
      $region29: #{tpu_custom_call.1} parent=5 // pred_check
        _
      $region30: #{tpu_custom_call.1} parent=5 // pred_check_branch
        %242 = sbr.rel (%p239) target = $region32
      $region31: #{tpu_custom_call.1} parent=5 // pred_region
        %s243 = ssub.s32 %s18, 1
        %s244 = sand.u32 %s52, 1
        %s245 = scalar_lea.sflag [#allocation5], %s244
        %s246 = sand.u32 %s52, 1
        %s247 = smul.addr %s246, 96
        %s248 = scalar_lea.vmem [#allocation4], %s247
        // Predicated region
        $region33: #{tpu_custom_call.1} parent=31 // pred_check
          %p249 = pneg %p65
        $region34: #{tpu_custom_call.1} parent=31 // pred_check_branch
          %251 = sbr.rel (%p249) target = $region36
        $region35: #{tpu_custom_call.1} parent=31 // pred_region
          %252 = dma.done %s245, 1536
        $region36: #{tpu_custom_call.1} parent=31 // pred_fallthru
          _
        %s253 = sand.u32 %s23, 1
        %s254 = scalar_lea.sflag [#allocation8], %s253
        %s255 = sand.u32 %s80, 1
        %s256 = smul.addr %s255, 48
        %s257 = scalar_lea.vmem [#allocation7], %s256
        // Predicated region
        $region37: #{tpu_custom_call.1} parent=31 // pred_check
          %p258 = pneg %p93
        $region38: #{tpu_custom_call.1} parent=31 // pred_check_branch
          %260 = sbr.rel (%p258) target = $region40
        $region39: #{tpu_custom_call.1} parent=31 // pred_region
          %261 = dma.done %s254, 768
        $region40: #{tpu_custom_call.1} parent=31 // pred_fallthru
          _
        %s262 = sand.u32 %s23, 1
        %s263 = scalar_lea.sflag [#allocation8], %s262
        %s264 = sand.u32 %s108, 1
        %s265 = smul.addr %s264, 128
        %s266 = scalar_lea.vmem [#allocation9], %s265
        // Predicated region
        $region41: #{tpu_custom_call.1} parent=31 // pred_check
          %p267 = pneg %p121
        $region42: #{tpu_custom_call.1} parent=31 // pred_check_branch
          %269 = sbr.rel (%p267) target = $region44
        $region43: #{tpu_custom_call.1} parent=31 // pred_region
          %270 = dma.done %s263, 2048
        $region44: #{tpu_custom_call.1} parent=31 // pred_fallthru
          _
        %s271 = sand.u32 %s52, 1
        %s272 = scalar_lea.sflag [#allocation5], %s271
        %s273 = sand.u32 %s52, 1
        %s274 = smul.addr %s273, 96
        %s275 = scalar_lea.vmem [#allocation4], %s274
        %p276 = pneg %p65
        %p277 = pneg %p62
        %s278 = sand.u32 %s23, 1
        %s279 = scalar_lea.sflag [#allocation8], %s278
        %s280 = sand.u32 %s80, 1
        %s281 = smul.addr %s280, 48
        %s282 = scalar_lea.vmem [#allocation7], %s281
        %p283 = pneg %p93
        %p284 = pneg %p90
        %s285 = sand.u32 %s23, 1
        %s286 = scalar_lea.sflag [#allocation8], %s285
        %s287 = sand.u32 %s108, 1
        %s288 = smul.addr %s287, 128
        %s289 = scalar_lea.vmem [#allocation9], %s288
        %p290 = pneg %p121
        %p291 = pneg %p118
        %p292 = pneg %p149
        %p293 = pneg %p146
        %s294 = sand.u32 %s136, 1
        %s295 = scalar_lea.sflag [#allocation6], %s294
        %s296 = sand.u32 %s136, 1
        %s297 = smul.addr %s296, 128
        %s298 = scalar_lea.vmem [#allocation10], %s297
        %s299 = smul.u32 4, %s30
        %s300 = smul.u32 2, %s29
        %s301 = smul.u32 4, %s30
        %s302 = smul.u32 2, %s29
        %p304 = scmp.eq.s32.totalorder %s30, 0
        // Predicated region
        $region45: #{tpu_custom_call.1} parent=31 // pred_check
          %p305 = pneg %p304
        $region46: #{tpu_custom_call.1} parent=31 // pred_check_branch
          %307 = sbr.rel (%p305) target = $region48
        $region47: #{tpu_custom_call.1} parent=31 // pred_region
          %v308 = vlaneseq
          %vm309 = vcmp.ge.s32.totalorder %v308, 0
          %vm310 = vcmp.lt.s32.totalorder %v308, 256
          %vm311 = vmand %vm309, %vm310
          %312 = vst.msk [vmem:[#allocation2] sm:$0x3] %vm311, -inf
          %313 = vst.msk [vmem:[#allocation3] sm:$0x3] %vm311, 0.0
          %314 = vst [vmem:[%s298] sm:$0xff] 0.0
          %315 = vst [vmem:[%s298 + $0x8] sm:$0xff] 0.0
          %316 = vst [vmem:[%s298 + $0x10] sm:$0xff] 0.0
          %317 = vst [vmem:[%s298 + $0x18] sm:$0xff] 0.0
          %318 = vst [vmem:[%s298 + $0x20] sm:$0xff] 0.0
          %319 = vst [vmem:[%s298 + $0x28] sm:$0xff] 0.0
          %320 = vst [vmem:[%s298 + $0x30] sm:$0xff] 0.0
          %321 = vst [vmem:[%s298 + $0x38] sm:$0xff] 0.0
          %322 = vst [vmem:[%s298 + $0x40] sm:$0xff] 0.0
          %323 = vst [vmem:[%s298 + $0x48] sm:$0xff] 0.0
          %324 = vst [vmem:[%s298 + $0x50] sm:$0xff] 0.0
          %325 = vst [vmem:[%s298 + $0x58] sm:$0xff] 0.0
          %326 = vst [vmem:[%s298 + $0x60] sm:$0xff] 0.0
          %327 = vst [vmem:[%s298 + $0x68] sm:$0xff] 0.0
          %328 = vst [vmem:[%s298 + $0x70] sm:$0xff] 0.0
          %329 = vst [vmem:[%s298 + $0x78] sm:$0xff] 0.0
        $region48: #{tpu_custom_call.1} parent=31 // pred_fallthru
          _
        %v330 = vld [vmem:[%s248] sm:$0xff]
        %v331 = vld [vmem:[%s248 + $0x8] sm:$0xff]
        %v332 = vld [vmem:[%s248 + $0x10] sm:$0xff]
        %v333 = vld [vmem:[%s248 + $0x18] sm:$0xff]
        %v334 = vld [vmem:[%s248 + $0x20] sm:$0xff]
        %v335 = vld [vmem:[%s248 + $0x28] sm:$0xff]
        %v336 = vld [vmem:[%s248 + $0x30] sm:$0xff]
        %v337 = vld [vmem:[%s248 + $0x38] sm:$0xff]
        %v338 = vld [vmem:[%s248 + $0x40] sm:$0xff]
        %v339 = vld [vmem:[%s248 + $0x48] sm:$0xff]
        %v340 = vld [vmem:[%s248 + $0x50] sm:$0xff]
        %v341 = vld [vmem:[%s248 + $0x58] sm:$0xff]
        %v342 = vld [vmem:[%s257] sm:$0xff]
        %v343 = vld [vmem:[%s257 + $0x8] sm:$0xff]
        %v344 = vld [vmem:[%s257 + $0x10] sm:$0xff]
        %v345 = vld [vmem:[%s257 + $0x18] sm:$0xff]
        %v346 = vld [vmem:[%s257 + $0x20] sm:$0xff]
        %v347 = vld [vmem:[%s257 + $0x28] sm:$0xff]
        %v360 = vunpack.c.l.b16 %v330
        %v361 = vunpack.c.h.b16 %v330
        %v362 = vunpack.c.l.b16 %v331
        %v363 = vunpack.c.h.b16 %v331
        %v364 = vunpack.c.l.b16 %v332
        %v365 = vunpack.c.h.b16 %v332
        %v366 = vunpack.c.l.b16 %v333
        %v367 = vunpack.c.h.b16 %v333
        %v368 = vunpack.c.l.b16 %v334
        %v369 = vunpack.c.h.b16 %v334
        %v370 = vunpack.c.l.b16 %v335
        %v371 = vunpack.c.h.b16 %v335
        %v372 = vunpack.c.l.b16 %v336
        %v373 = vunpack.c.h.b16 %v336
        %v374 = vunpack.c.l.b16 %v337
        %v375 = vunpack.c.h.b16 %v337
        %v376 = vunpack.c.l.b16 %v338
        %v377 = vunpack.c.h.b16 %v338
        %v378 = vunpack.c.l.b16 %v339
        %v379 = vunpack.c.h.b16 %v339
        %v380 = vunpack.c.l.b16 %v340
        %v381 = vunpack.c.h.b16 %v340
        %v382 = vunpack.c.l.b16 %v341
        %v383 = vunpack.c.h.b16 %v341
        %v384 = vpack.c.b16 %v364, %v360
        %v385 = vpack.c.b16 %v365, %v361
        %v386 = vpack.c.b16 %v366, %v362
        %v387 = vpack.c.b16 %v367, %v363
        %v388 = vpack.c.b16 %v372, %v368
        %v389 = vpack.c.b16 %v373, %v369
        %v390 = vpack.c.b16 %v374, %v370
        %v391 = vpack.c.b16 %v375, %v371
        %v392 = vpack.c.b16 %v380, %v376
        %v393 = vpack.c.b16 %v381, %v377
        %v394 = vpack.c.b16 %v382, %v378
        %v395 = vpack.c.b16 %v383, %v379
        %408 = vxpose.xlu0.c.b16.start [1/8] %v384, 128
        %409 = vxpose.xlu0.c.b16.cont [2/8] %v388, 128
        %410 = vxpose.xlu0.c.b16.cont [3/8] %v392, 128
        %411 = vxpose.xlu0.c.b16.cont [4/8] 0, 128
        %412 = vxpose.xlu0.c.b16.cont [5/8] 0, 128
        %413 = vxpose.xlu0.c.b16.cont [6/8] 0, 128
        %414 = vxpose.xlu0.c.b16.cont [7/8] 0, 128
        %415 = vxpose.xlu0.c.b16.end [8/8] 0, 128
        %v416 = vpop.trf.xlu0
        %v417 = vpop.trf.xlu0
        %v418 = vpop.trf.xlu0
        %v419 = vpop.trf.xlu0
        %v420 = vpop.trf.xlu0
        %v421 = vpop.trf.xlu0
        %v422 = vpop.trf.xlu0
        %v423 = vpop.trf.xlu0
        %424 = vxpose.xlu0.c.b16.start [1/8] %v385, 128
        %425 = vxpose.xlu0.c.b16.cont [2/8] %v389, 128
        %426 = vxpose.xlu0.c.b16.cont [3/8] %v393, 128
        %427 = vxpose.xlu0.c.b16.cont [4/8] 0, 128
        %428 = vxpose.xlu0.c.b16.cont [5/8] 0, 128
        %429 = vxpose.xlu0.c.b16.cont [6/8] 0, 128
        %430 = vxpose.xlu0.c.b16.cont [7/8] 0, 128
        %431 = vxpose.xlu0.c.b16.end [8/8] 0, 128
        %v432 = vpop.trf.xlu0
        %v433 = vpop.trf.xlu0
        %v434 = vpop.trf.xlu0
        %v435 = vpop.trf.xlu0
        %v436 = vpop.trf.xlu0
        %v437 = vpop.trf.xlu0
        %v438 = vpop.trf.xlu0
        %v439 = vpop.trf.xlu0
        %440 = vxpose.xlu0.c.b16.start [1/8] %v386, 128
        %441 = vxpose.xlu0.c.b16.cont [2/8] %v390, 128
        %442 = vxpose.xlu0.c.b16.cont [3/8] %v394, 128
        %443 = vxpose.xlu0.c.b16.cont [4/8] 0, 128
        %444 = vxpose.xlu0.c.b16.cont [5/8] 0, 128
        %445 = vxpose.xlu0.c.b16.cont [6/8] 0, 128
        %446 = vxpose.xlu0.c.b16.cont [7/8] 0, 128
        %447 = vxpose.xlu0.c.b16.end [8/8] 0, 128
        %v448 = vpop.trf.xlu0
        %v449 = vpop.trf.xlu0
        %v450 = vpop.trf.xlu0
        %v451 = vpop.trf.xlu0
        %v452 = vpop.trf.xlu0
        %v453 = vpop.trf.xlu0
        %v454 = vpop.trf.xlu0
        %v455 = vpop.trf.xlu0
        %456 = vxpose.xlu0.c.b16.start [1/8] %v387, 128
        %457 = vxpose.xlu0.c.b16.cont [2/8] %v391, 128
        %458 = vxpose.xlu0.c.b16.cont [3/8] %v395, 128
        %459 = vxpose.xlu0.c.b16.cont [4/8] 0, 128
        %460 = vxpose.xlu0.c.b16.cont [5/8] 0, 128
        %461 = vxpose.xlu0.c.b16.cont [6/8] 0, 128
        %462 = vxpose.xlu0.c.b16.cont [7/8] 0, 128
        %463 = vxpose.xlu0.c.b16.end [8/8] 0, 128
        %v464 = vpop.trf.xlu0
        %v465 = vpop.trf.xlu0
        %v466 = vpop.trf.xlu0
        %v467 = vpop.trf.xlu0
        %v468 = vpop.trf.xlu0
        %v469 = vpop.trf.xlu0
        %v470 = vpop.trf.xlu0
        %v471 = vpop.trf.xlu0
        %v478 = vunpack.c.l.b16 %v342
        %v479 = vunpack.c.h.b16 %v342
        %v480 = vunpack.c.l.b16 %v343
        %v481 = vunpack.c.h.b16 %v343
        %v482 = vunpack.c.l.b16 %v344
        %v483 = vunpack.c.h.b16 %v344
        %v484 = vunpack.c.l.b16 %v345
        %v485 = vunpack.c.h.b16 %v345
        %v486 = vunpack.c.l.b16 %v346
        %v487 = vunpack.c.h.b16 %v346
        %v488 = vunpack.c.l.b16 %v347
        %v489 = vunpack.c.h.b16 %v347
        %v490 = vpack.c.b16 %v480, %v478
        %v491 = vpack.c.b16 %v481, %v479
        %v492 = vpack.c.b16 %v484, %v482
        %v493 = vpack.c.b16 %v485, %v483
        %v494 = vpack.c.b16 %v488, %v486
        %v495 = vpack.c.b16 %v489, %v487
        %vm502 = vcmask 392192
        %v504 = vsel %vm502, %v416, 0
        %v507 = vsel %vm502, %v417, 0
        %v510 = vsel %vm502, %v418, 0
        %v513 = vsel %vm502, %v419, 0
        %v516 = vsel %vm502, %v420, 0
        %v519 = vsel %vm502, %v421, 0
        %v522 = vsel %vm502, %v422, 0
        %v525 = vsel %vm502, %v423, 0
        %v528 = vsel %vm502, %v432, 0
        %v531 = vsel %vm502, %v433, 0
        %v534 = vsel %vm502, %v434, 0
        %v537 = vsel %vm502, %v435, 0
        %v540 = vsel %vm502, %v436, 0
        %v543 = vsel %vm502, %v437, 0
        %v546 = vsel %vm502, %v438, 0
        %v549 = vsel %vm502, %v439, 0
        %v552 = vsel %vm502, %v448, 0
        %v555 = vsel %vm502, %v449, 0
        %v558 = vsel %vm502, %v450, 0
        %v561 = vsel %vm502, %v451, 0
        %v564 = vsel %vm502, %v452, 0
        %v567 = vsel %vm502, %v453, 0
        %v570 = vsel %vm502, %v454, 0
        %v573 = vsel %vm502, %v455, 0
        %v576 = vsel %vm502, %v464, 0
        %v579 = vsel %vm502, %v465, 0
        %v582 = vsel %vm502, %v466, 0
        %v585 = vsel %vm502, %v467, 0
        %v588 = vsel %vm502, %v468, 0
        %v591 = vsel %vm502, %v469, 0
        %v594 = vsel %vm502, %v470, 0
        %v597 = vsel %vm502, %v471, 0
        %599 = vmatprep.subr.bf16.mxu0 %v491
        %600 = vmatpush1.bf16.msra.mxu0 %v490
        %601 = vmatprep.subr.bf16.mxu0 %v493
        %602 = vmatpush1.bf16.msra.mxu0 %v492
        %603 = vmatprep.subr.bf16.mxu0 %v495
        %604 = vmatpush1.bf16.msra.mxu0 %v494
        %605 = vmatprep.subr.bf16.mxu0 0
        %606 = vmatpush1.bf16.msra.mxu0 0
        %607 = vmatprep.subr.bf16.mxu0 0
        %608 = vmatpush1.bf16.msra.mxu0 0
        %609 = vmatprep.subr.bf16.mxu0 0
        %610 = vmatpush1.bf16.msra.mxu0 0
        %611 = vmatprep.subr.bf16.mxu0 0
        %612 = vmatpush1.bf16.msra.mxu0 0
        %613 = vmatprep.subr.bf16.mxu0 0
        %614 = vmatpush1.bf16.msra.mxu0 0
        %615 = vmatprep.subr.bf16.mxu0 0
        %616 = vmatpush1.bf16.msra.mxu0 0
        %617 = vmatprep.subr.bf16.mxu0 0
        %618 = vmatpush1.bf16.msra.mxu0 0
        %619 = vmatprep.subr.bf16.mxu0 0
        %620 = vmatpush1.bf16.msra.mxu0 0
        %621 = vmatprep.subr.bf16.mxu0 0
        %622 = vmatpush1.bf16.msra.mxu0 0
        %623 = vmatprep.subr.bf16.mxu0 0
        %624 = vmatpush1.bf16.msra.mxu0 0
        %625 = vmatprep.subr.bf16.mxu0 0
        %626 = vmatpush1.bf16.msra.mxu0 0
        %627 = vmatprep.subr.bf16.mxu0 0
        %628 = vmatpush1.bf16.msra.mxu0 0
        %629 = vmatprep.subr.bf16.mxu0 0
        %630 = vmatpush1.bf16.msra.mxu0 0
        %631 = vmatprep.mubr.bf16.mxu0 0
        %632 = vmatmul.mubr.bf16.gmra.mrb[0].mxu0 %v504
        %v633 = vpop.f32.mrb[0].mxu0
        %v634 = vadd.f32 0.0, %v633
        %v635 = vpop.f32.mrb[0].mxu0
        %v636 = vadd.f32 0.0, %v635
        %v637 = vpop.f32.mrb[0].mxu0
        %v638 = vadd.f32 0.0, %v637
        %v639 = vpop.f32.mrb[0].mxu0
        %v640 = vadd.f32 0.0, %v639
        %641 = vmatprep.mubr.bf16.mxu0 0
        %642 = vmatmul.mubr.bf16.gmra.mrb[0].mxu0 %v507
        %v643 = vpop.f32.mrb[0].mxu0
        %v644 = vadd.f32 0.0, %v643
        %v645 = vpop.f32.mrb[0].mxu0
        %v646 = vadd.f32 0.0, %v645
        %v647 = vpop.f32.mrb[0].mxu0
        %v648 = vadd.f32 0.0, %v647
        %v649 = vpop.f32.mrb[0].mxu0
        %v650 = vadd.f32 0.0, %v649
        %651 = vmatprep.mubr.bf16.mxu0 0
        %652 = vmatmul.mubr.bf16.gmra.mrb[0].mxu0 %v510
        %v653 = vpop.f32.mrb[0].mxu0
        %v654 = vadd.f32 0.0, %v653
        %v655 = vpop.f32.mrb[0].mxu0
        %v656 = vadd.f32 0.0, %v655
        %v657 = vpop.f32.mrb[0].mxu0
        %v658 = vadd.f32 0.0, %v657
        %v659 = vpop.f32.mrb[0].mxu0
        %v660 = vadd.f32 0.0, %v659
        %661 = vmatprep.mubr.bf16.mxu0 0
        %662 = vmatmul.mubr.bf16.gmra.mrb[0].mxu0 %v513
        %v663 = vpop.f32.mrb[0].mxu0
        %v664 = vadd.f32 0.0, %v663
        %v665 = vpop.f32.mrb[0].mxu0
        %v666 = vadd.f32 0.0, %v665
        %v667 = vpop.f32.mrb[0].mxu0
        %v668 = vadd.f32 0.0, %v667
        %v669 = vpop.f32.mrb[0].mxu0
        %v670 = vadd.f32 0.0, %v669
        %671 = vmatprep.mubr.bf16.mxu0 0
        %672 = vmatmul.mubr.bf16.gmra.mrb[0].mxu0 %v516
        %v673 = vpop.f32.mrb[0].mxu0
        %v674 = vadd.f32 0.0, %v673
        %v675 = vpop.f32.mrb[0].mxu0
        %v676 = vadd.f32 0.0, %v675
        %v677 = vpop.f32.mrb[0].mxu0
        %v678 = vadd.f32 0.0, %v677
        %v679 = vpop.f32.mrb[0].mxu0
        %v680 = vadd.f32 0.0, %v679
        %681 = vmatprep.mubr.bf16.mxu0 0
        %682 = vmatmul.mubr.bf16.gmra.mrb[0].mxu0 %v519
        %v683 = vpop.f32.mrb[0].mxu0
        %v684 = vadd.f32 0.0, %v683
        %v685 = vpop.f32.mrb[0].mxu0
        %v686 = vadd.f32 0.0, %v685
        %v687 = vpop.f32.mrb[0].mxu0
        %v688 = vadd.f32 0.0, %v687
        %v689 = vpop.f32.mrb[0].mxu0
        %v690 = vadd.f32 0.0, %v689
        %691 = vmatprep.mubr.bf16.mxu0 0
        %692 = vmatmul.mubr.bf16.gmra.mrb[0].mxu0 %v522
        %v693 = vpop.f32.mrb[0].mxu0
        %v694 = vadd.f32 0.0, %v693
        %v695 = vpop.f32.mrb[0].mxu0
        %v696 = vadd.f32 0.0, %v695
        %v697 = vpop.f32.mrb[0].mxu0
        %v698 = vadd.f32 0.0, %v697
        %v699 = vpop.f32.mrb[0].mxu0
        %v700 = vadd.f32 0.0, %v699
        %701 = vmatprep.mubr.bf16.mxu0 0
        %702 = vmatmul.mubr.bf16.gmra.mrb[0].mxu0 %v525
        %v703 = vpop.f32.mrb[0].mxu0
        %v704 = vadd.f32 0.0, %v703
        %v705 = vpop.f32.mrb[0].mxu0
        %v706 = vadd.f32 0.0, %v705
        %v707 = vpop.f32.mrb[0].mxu0
        %v708 = vadd.f32 0.0, %v707
        %v709 = vpop.f32.mrb[0].mxu0
        %v710 = vadd.f32 0.0, %v709
        %711 = vmatprep.mubr.bf16.mxu0 0
        %712 = vmatmul.mubr.bf16.gmra.mrb[0].mxu0 %v528
        %v713 = vpop.f32.mrb[0].mxu0
        %v714 = vadd.f32 0.0, %v713
        %v715 = vpop.f32.mrb[0].mxu0
        %v716 = vadd.f32 0.0, %v715
        %v717 = vpop.f32.mrb[0].mxu0
        %v718 = vadd.f32 0.0, %v717
        %v719 = vpop.f32.mrb[0].mxu0
        %v720 = vadd.f32 0.0, %v719
        %721 = vmatprep.mubr.bf16.mxu0 0
        %722 = vmatmul.mubr.bf16.gmra.mrb[0].mxu0 %v531
        %v723 = vpop.f32.mrb[0].mxu0
        %v724 = vadd.f32 0.0, %v723
        %v725 = vpop.f32.mrb[0].mxu0
        %v726 = vadd.f32 0.0, %v725
        %v727 = vpop.f32.mrb[0].mxu0
        %v728 = vadd.f32 0.0, %v727
        %v729 = vpop.f32.mrb[0].mxu0
        %v730 = vadd.f32 0.0, %v729
        %731 = vmatprep.mubr.bf16.mxu0 0
        %732 = vmatmul.mubr.bf16.gmra.mrb[0].mxu0 %v534
        %v733 = vpop.f32.mrb[0].mxu0
        %v734 = vadd.f32 0.0, %v733
        %v735 = vpop.f32.mrb[0].mxu0
        %v736 = vadd.f32 0.0, %v735
        %v737 = vpop.f32.mrb[0].mxu0
        %v738 = vadd.f32 0.0, %v737
        %v739 = vpop.f32.mrb[0].mxu0
        %v740 = vadd.f32 0.0, %v739
        %741 = vmatprep.mubr.bf16.mxu0 0
        %742 = vmatmul.mubr.bf16.gmra.mrb[0].mxu0 %v537
        %v743 = vpop.f32.mrb[0].mxu0
        %v744 = vadd.f32 0.0, %v743
        %v745 = vpop.f32.mrb[0].mxu0
        %v746 = vadd.f32 0.0, %v745
        %v747 = vpop.f32.mrb[0].mxu0
        %v748 = vadd.f32 0.0, %v747
        %v749 = vpop.f32.mrb[0].mxu0
        %v750 = vadd.f32 0.0, %v749
        %751 = vmatprep.mubr.bf16.mxu0 0
        %752 = vmatmul.mubr.bf16.gmra.mrb[0].mxu0 %v540
        %v753 = vpop.f32.mrb[0].mxu0
        %v754 = vadd.f32 0.0, %v753
        %v755 = vpop.f32.mrb[0].mxu0
        %v756 = vadd.f32 0.0, %v755
        %v757 = vpop.f32.mrb[0].mxu0
        %v758 = vadd.f32 0.0, %v757
        %v759 = vpop.f32.mrb[0].mxu0
        %v760 = vadd.f32 0.0, %v759
        %761 = vmatprep.mubr.bf16.mxu0 0
        %762 = vmatmul.mubr.bf16.gmra.mrb[0].mxu0 %v543
        %v763 = vpop.f32.mrb[0].mxu0
        %v764 = vadd.f32 0.0, %v763
        %v765 = vpop.f32.mrb[0].mxu0
        %v766 = vadd.f32 0.0, %v765
        %v767 = vpop.f32.mrb[0].mxu0
        %v768 = vadd.f32 0.0, %v767
        %v769 = vpop.f32.mrb[0].mxu0
        %v770 = vadd.f32 0.0, %v769
        %771 = vmatprep.mubr.bf16.mxu0 0
        %772 = vmatmul.mubr.bf16.gmra.mrb[0].mxu0 %v546
        %v773 = vpop.f32.mrb[0].mxu0
        %v774 = vadd.f32 0.0, %v773
        %v775 = vpop.f32.mrb[0].mxu0
        %v776 = vadd.f32 0.0, %v775
        %v777 = vpop.f32.mrb[0].mxu0
        %v778 = vadd.f32 0.0, %v777
        %v779 = vpop.f32.mrb[0].mxu0
        %v780 = vadd.f32 0.0, %v779
        %781 = vmatprep.mubr.bf16.mxu0 0
        %782 = vmatmul.mubr.bf16.gmra.mrb[0].mxu0 %v549
        %v783 = vpop.f32.mrb[0].mxu0
        %v784 = vadd.f32 0.0, %v783
        %v785 = vpop.f32.mrb[0].mxu0
        %v786 = vadd.f32 0.0, %v785
        %v787 = vpop.f32.mrb[0].mxu0
        %v788 = vadd.f32 0.0, %v787
        %v789 = vpop.f32.mrb[0].mxu0
        %v790 = vadd.f32 0.0, %v789
        %791 = vmatprep.mubr.bf16.mxu0 0
        %792 = vmatmul.mubr.bf16.gmra.mrb[0].mxu0 %v552
        %v793 = vpop.f32.mrb[0].mxu0
        %v794 = vadd.f32 0.0, %v793
        %v795 = vpop.f32.mrb[0].mxu0
        %v796 = vadd.f32 0.0, %v795
        %v797 = vpop.f32.mrb[0].mxu0
        %v798 = vadd.f32 0.0, %v797
        %v799 = vpop.f32.mrb[0].mxu0
        %v800 = vadd.f32 0.0, %v799
        %801 = vmatprep.mubr.bf16.mxu0 0
        %802 = vmatmul.mubr.bf16.gmra.mrb[0].mxu0 %v555
        %v803 = vpop.f32.mrb[0].mxu0
        %v804 = vadd.f32 0.0, %v803
        %v805 = vpop.f32.mrb[0].mxu0
        %v806 = vadd.f32 0.0, %v805
        %v807 = vpop.f32.mrb[0].mxu0
        %v808 = vadd.f32 0.0, %v807
        %v809 = vpop.f32.mrb[0].mxu0
        %v810 = vadd.f32 0.0, %v809
        %811 = vmatprep.mubr.bf16.mxu0 0
        %812 = vmatmul.mubr.bf16.gmra.mrb[0].mxu0 %v558
        %v813 = vpop.f32.mrb[0].mxu0
        %v814 = vadd.f32 0.0, %v813
        %v815 = vpop.f32.mrb[0].mxu0
        %v816 = vadd.f32 0.0, %v815
        %v817 = vpop.f32.mrb[0].mxu0
        %v818 = vadd.f32 0.0, %v817
        %v819 = vpop.f32.mrb[0].mxu0
        %v820 = vadd.f32 0.0, %v819
        %821 = vmatprep.mubr.bf16.mxu0 0
        %822 = vmatmul.mubr.bf16.gmra.mrb[0].mxu0 %v561
        %v823 = vpop.f32.mrb[0].mxu0
        %v824 = vadd.f32 0.0, %v823
        %v825 = vpop.f32.mrb[0].mxu0
        %v826 = vadd.f32 0.0, %v825
        %v827 = vpop.f32.mrb[0].mxu0
        %v828 = vadd.f32 0.0, %v827
        %v829 = vpop.f32.mrb[0].mxu0
        %v830 = vadd.f32 0.0, %v829
        %831 = vmatprep.mubr.bf16.mxu0 0
        %832 = vmatmul.mubr.bf16.gmra.mrb[0].mxu0 %v564
        %v833 = vpop.f32.mrb[0].mxu0
        %v834 = vadd.f32 0.0, %v833
        %v835 = vpop.f32.mrb[0].mxu0
        %v836 = vadd.f32 0.0, %v835
        %v837 = vpop.f32.mrb[0].mxu0
        %v838 = vadd.f32 0.0, %v837
        %v839 = vpop.f32.mrb[0].mxu0
        %v840 = vadd.f32 0.0, %v839
        %841 = vmatprep.mubr.bf16.mxu0 0
        %842 = vmatmul.mubr.bf16.gmra.mrb[0].mxu0 %v567
        %v843 = vpop.f32.mrb[0].mxu0
        %v844 = vadd.f32 0.0, %v843
        %v845 = vpop.f32.mrb[0].mxu0
        %v846 = vadd.f32 0.0, %v845
        %v847 = vpop.f32.mrb[0].mxu0
        %v848 = vadd.f32 0.0, %v847
        %v849 = vpop.f32.mrb[0].mxu0
        %v850 = vadd.f32 0.0, %v849
        %851 = vmatprep.mubr.bf16.mxu0 0
        %852 = vmatmul.mubr.bf16.gmra.mrb[0].mxu0 %v570
        %v853 = vpop.f32.mrb[0].mxu0
        %v854 = vadd.f32 0.0, %v853
        %v855 = vpop.f32.mrb[0].mxu0
        %v856 = vadd.f32 0.0, %v855
        %v857 = vpop.f32.mrb[0].mxu0
        %v858 = vadd.f32 0.0, %v857
        %v859 = vpop.f32.mrb[0].mxu0
        %v860 = vadd.f32 0.0, %v859
        %861 = vmatprep.mubr.bf16.mxu0 0
        %862 = vmatmul.mubr.bf16.gmra.mrb[0].mxu0 %v573
        %v863 = vpop.f32.mrb[0].mxu0
        %v864 = vadd.f32 0.0, %v863
        %v865 = vpop.f32.mrb[0].mxu0
        %v866 = vadd.f32 0.0, %v865
        %v867 = vpop.f32.mrb[0].mxu0
        %v868 = vadd.f32 0.0, %v867
        %v869 = vpop.f32.mrb[0].mxu0
        %v870 = vadd.f32 0.0, %v869
        %871 = vmatprep.mubr.bf16.mxu0 0
        %872 = vmatmul.mubr.bf16.gmra.mrb[0].mxu0 %v576
        %v873 = vpop.f32.mrb[0].mxu0
        %v874 = vadd.f32 0.0, %v873
        %v875 = vpop.f32.mrb[0].mxu0
        %v876 = vadd.f32 0.0, %v875
        %v877 = vpop.f32.mrb[0].mxu0
        %v878 = vadd.f32 0.0, %v877
        %v879 = vpop.f32.mrb[0].mxu0
        %v880 = vadd.f32 0.0, %v879
        %881 = vmatprep.mubr.bf16.mxu0 0
        %882 = vmatmul.mubr.bf16.gmra.mrb[0].mxu0 %v579
        %v883 = vpop.f32.mrb[0].mxu0
        %v884 = vadd.f32 0.0, %v883
        %v885 = vpop.f32.mrb[0].mxu0
        %v886 = vadd.f32 0.0, %v885
        %v887 = vpop.f32.mrb[0].mxu0
        %v888 = vadd.f32 0.0, %v887
        %v889 = vpop.f32.mrb[0].mxu0
        %v890 = vadd.f32 0.0, %v889
        %891 = vmatprep.mubr.bf16.mxu0 0
        %892 = vmatmul.mubr.bf16.gmra.mrb[0].mxu0 %v582
        %v893 = vpop.f32.mrb[0].mxu0
        %v894 = vadd.f32 0.0, %v893
        %v895 = vpop.f32.mrb[0].mxu0
        %v896 = vadd.f32 0.0, %v895
        %v897 = vpop.f32.mrb[0].mxu0
        %v898 = vadd.f32 0.0, %v897
        %v899 = vpop.f32.mrb[0].mxu0
        %v900 = vadd.f32 0.0, %v899
        %901 = vmatprep.mubr.bf16.mxu0 0
        %902 = vmatmul.mubr.bf16.gmra.mrb[0].mxu0 %v585
        %v903 = vpop.f32.mrb[0].mxu0
        %v904 = vadd.f32 0.0, %v903
        %v905 = vpop.f32.mrb[0].mxu0
        %v906 = vadd.f32 0.0, %v905
        %v907 = vpop.f32.mrb[0].mxu0
        %v908 = vadd.f32 0.0, %v907
        %v909 = vpop.f32.mrb[0].mxu0
        %v910 = vadd.f32 0.0, %v909
        %911 = vmatprep.mubr.bf16.mxu0 0
        %912 = vmatmul.mubr.bf16.gmra.mrb[0].mxu0 %v588
        %v913 = vpop.f32.mrb[0].mxu0
        %v914 = vadd.f32 0.0, %v913
        %v915 = vpop.f32.mrb[0].mxu0
        %v916 = vadd.f32 0.0, %v915
        %v917 = vpop.f32.mrb[0].mxu0
        %v918 = vadd.f32 0.0, %v917
        %v919 = vpop.f32.mrb[0].mxu0
        %v920 = vadd.f32 0.0, %v919
        %921 = vmatprep.mubr.bf16.mxu0 0
        %922 = vmatmul.mubr.bf16.gmra.mrb[0].mxu0 %v591
        %v923 = vpop.f32.mrb[0].mxu0
        %v924 = vadd.f32 0.0, %v923
        %v925 = vpop.f32.mrb[0].mxu0
        %v926 = vadd.f32 0.0, %v925
        %v927 = vpop.f32.mrb[0].mxu0
        %v928 = vadd.f32 0.0, %v927
        %v929 = vpop.f32.mrb[0].mxu0
        %v930 = vadd.f32 0.0, %v929
        %931 = vmatprep.mubr.bf16.mxu0 0
        %932 = vmatmul.mubr.bf16.gmra.mrb[0].mxu0 %v594
        %v933 = vpop.f32.mrb[0].mxu0
        %v934 = vadd.f32 0.0, %v933
        %v935 = vpop.f32.mrb[0].mxu0
        %v936 = vadd.f32 0.0, %v935
        %v937 = vpop.f32.mrb[0].mxu0
        %v938 = vadd.f32 0.0, %v937
        %v939 = vpop.f32.mrb[0].mxu0
        %v940 = vadd.f32 0.0, %v939
        %941 = vmatprep.mubr.bf16.mxu0 0
        %942 = vmatmul.mubr.bf16.gmra.mrb[0].mxu0 %v597
        %v943 = vpop.f32.mrb[0].mxu0
        %v944 = vadd.f32 0.0, %v943
        %v945 = vpop.f32.mrb[0].mxu0
        %v946 = vadd.f32 0.0, %v945
        %v947 = vpop.f32.mrb[0].mxu0
        %v948 = vadd.f32 0.0, %v947
        %v949 = vpop.f32.mrb[0].mxu0
        %v950 = vadd.f32 0.0, %v949
        %951 = vdwg.mxu0
        %v952 = vld [vmem:[#allocation2] sm:$0x3]
        %v953 = vmax.f32 %v634, %v644
        %v954 = vmax.f32 %v638, %v648
        %v955 = vmax.f32 %v953, %v654
        %v956 = vmax.f32 %v954, %v658
        %v957 = vmax.f32 %v955, %v664
        %v958 = vmax.f32 %v956, %v668
        %v959 = vmax.f32 %v957, %v674
        %v960 = vmax.f32 %v958, %v678
        %v961 = vmax.f32 %v959, %v684
        %v962 = vmax.f32 %v960, %v688
        %v963 = vmax.f32 %v961, %v694
        %v964 = vmax.f32 %v962, %v698
        %v965 = vmax.f32 %v963, %v704
        %v966 = vmax.f32 %v964, %v708
        %v967 = vmax.f32 %v965, %v714
        %v968 = vmax.f32 %v966, %v718
        %v969 = vmax.f32 %v967, %v724
        %v970 = vmax.f32 %v968, %v728
        %v971 = vmax.f32 %v969, %v734
        %v972 = vmax.f32 %v970, %v738
        %v973 = vmax.f32 %v971, %v744
        %v974 = vmax.f32 %v972, %v748
        %v975 = vmax.f32 %v973, %v754
        %v976 = vmax.f32 %v974, %v758
        %v977 = vmax.f32 %v975, %v764
        %v978 = vmax.f32 %v976, %v768
        %v979 = vmax.f32 %v977, %v774
        %v980 = vmax.f32 %v978, %v778
        %v981 = vmax.f32 %v979, %v784
        %v982 = vmax.f32 %v980, %v788
        %v983 = vmax.f32 %v981, %v794
        %v984 = vmax.f32 %v982, %v798
        %v985 = vmax.f32 %v983, %v804
        %v986 = vmax.f32 %v984, %v808
        %v987 = vmax.f32 %v985, %v814
        %v988 = vmax.f32 %v986, %v818
        %v989 = vmax.f32 %v987, %v824
        %v990 = vmax.f32 %v988, %v828
        %v991 = vmax.f32 %v989, %v834
        %v992 = vmax.f32 %v990, %v838
        %v993 = vmax.f32 %v991, %v844
        %v994 = vmax.f32 %v992, %v848
        %v995 = vmax.f32 %v993, %v854
        %v996 = vmax.f32 %v994, %v858
        %v997 = vmax.f32 %v995, %v864
        %v998 = vmax.f32 %v996, %v868
        %v999 = vmax.f32 %v997, %v874
        %v1000 = vmax.f32 %v998, %v878
        %v1001 = vmax.f32 %v999, %v884
        %v1002 = vmax.f32 %v1000, %v888
        %v1003 = vmax.f32 %v1001, %v894
        %v1004 = vmax.f32 %v1002, %v898
        %v1005 = vmax.f32 %v1003, %v904
        %v1006 = vmax.f32 %v1004, %v908
        %v1007 = vmax.f32 %v1005, %v914
        %v1008 = vmax.f32 %v1006, %v918
        %v1009 = vmax.f32 %v1007, %v924
        %v1010 = vmax.f32 %v1008, %v928
        %v1011 = vmax.f32 %v1009, %v934
        %v1012 = vmax.f32 %v1010, %v938
        %v1013 = vmax.f32 %v1011, %v944
        %v1014 = vmax.f32 %v1012, %v948
        %v1015 = vmax.f32 %v1013, %v1014
        %v1016 = vrot.slane %v1015, 4
        %v1017 = vmax.f32 %v1015, %v1016
        %v1018 = vrot.slane %v1017, 2
        %v1019 = vmax.f32 %v1017, %v1018
        %v1020 = vrot.slane %v1019, 1
        %v1021 = vmax.f32 %v1019, %v1020
        %v1022 = vmax.f32 %v636, %v646
        %v1023 = vmax.f32 %v640, %v650
        %v1024 = vmax.f32 %v1022, %v656
        %v1025 = vmax.f32 %v1023, %v660
        %v1026 = vmax.f32 %v1024, %v666
        %v1027 = vmax.f32 %v1025, %v670
        %v1028 = vmax.f32 %v1026, %v676
        %v1029 = vmax.f32 %v1027, %v680
        %v1030 = vmax.f32 %v1028, %v686
        %v1031 = vmax.f32 %v1029, %v690
        %v1032 = vmax.f32 %v1030, %v696
        %v1033 = vmax.f32 %v1031, %v700
        %v1034 = vmax.f32 %v1032, %v706
        %v1035 = vmax.f32 %v1033, %v710
        %v1036 = vmax.f32 %v1034, %v716
        %v1037 = vmax.f32 %v1035, %v720
        %v1038 = vmax.f32 %v1036, %v726
        %v1039 = vmax.f32 %v1037, %v730
        %v1040 = vmax.f32 %v1038, %v736
        %v1041 = vmax.f32 %v1039, %v740
        %v1042 = vmax.f32 %v1040, %v746
        %v1043 = vmax.f32 %v1041, %v750
        %v1044 = vmax.f32 %v1042, %v756
        %v1045 = vmax.f32 %v1043, %v760
        %v1046 = vmax.f32 %v1044, %v766
        %v1047 = vmax.f32 %v1045, %v770
        %v1048 = vmax.f32 %v1046, %v776
        %v1049 = vmax.f32 %v1047, %v780
        %v1050 = vmax.f32 %v1048, %v786
        %v1051 = vmax.f32 %v1049, %v790
        %v1052 = vmax.f32 %v1050, %v796
        %v1053 = vmax.f32 %v1051, %v800
        %v1054 = vmax.f32 %v1052, %v806
        %v1055 = vmax.f32 %v1053, %v810
        %v1056 = vmax.f32 %v1054, %v816
        %v1057 = vmax.f32 %v1055, %v820
        %v1058 = vmax.f32 %v1056, %v826
        %v1059 = vmax.f32 %v1057, %v830
        %v1060 = vmax.f32 %v1058, %v836
        %v1061 = vmax.f32 %v1059, %v840
        %v1062 = vmax.f32 %v1060, %v846
        %v1063 = vmax.f32 %v1061, %v850
        %v1064 = vmax.f32 %v1062, %v856
        %v1065 = vmax.f32 %v1063, %v860
        %v1066 = vmax.f32 %v1064, %v866
        %v1067 = vmax.f32 %v1065, %v870
        %v1068 = vmax.f32 %v1066, %v876
        %v1069 = vmax.f32 %v1067, %v880
        %v1070 = vmax.f32 %v1068, %v886
        %v1071 = vmax.f32 %v1069, %v890
        %v1072 = vmax.f32 %v1070, %v896
        %v1073 = vmax.f32 %v1071, %v900
        %v1074 = vmax.f32 %v1072, %v906
        %v1075 = vmax.f32 %v1073, %v910
        %v1076 = vmax.f32 %v1074, %v916
        %v1077 = vmax.f32 %v1075, %v920
        %v1078 = vmax.f32 %v1076, %v926
        %v1079 = vmax.f32 %v1077, %v930
        %v1080 = vmax.f32 %v1078, %v936
        %v1081 = vmax.f32 %v1079, %v940
        %v1082 = vmax.f32 %v1080, %v946
        %v1083 = vmax.f32 %v1081, %v950
        %v1084 = vmax.f32 %v1082, %v1083
        %v1085 = vrot.slane %v1084, 4
        %v1086 = vmax.f32 %v1084, %v1085
        %v1087 = vrot.slane %v1086, 2
        %v1088 = vmax.f32 %v1086, %v1087
        %v1089 = vrot.slane %v1088, 1
        %v1090 = vmax.f32 %v1088, %v1089
        %v1093 = vcombine.low %v1021, %v1090
        %v1095 = vunpack.c.l.s4 1966171168
        %v1096 = vunpack.c.0.s8 %v1095
        %v1097 = vlaneseq
        %v1098 = vshrl.u32 %v1097, 7
        %v1099 = vsub.s32 %v1096, %v1098
        %v1100 = vrot.slane %v1093, %v1099
        %v1102 = vunpack.c.l.s4 1966171168
        %v1103 = vunpack.c.0.s8 %v1102
        %v1104 = vlaneseq
        %v1105 = vshrl.u32 %v1104, 7
        %v1106 = vsub.s32 %v1103, %v1105
        %v1107 = vrot.slane %v1100, %v1106
        %v1109 = vmax.f32 %v952, %v1107
        %v1110 = vsub.f32 %v952, %v1109
        %v1111 = vmul.f32 %v1110, 1.442695
        %v1112 = vpow.pop %v1111
        %v1114 = vlaneseq
        %v1115 = vshrl.u32 %v1114, 7
        %v1116 = vsub.s32 0, %v1115
        %v1117 = vrot.slane %v1109, %v1116
        %v1118 = vlaneseq
        %v1119 = vshrl.u32 %v1118, 7
        %v1120 = vsub.s32 1, %v1119
        %v1121 = vrot.slane %v1109, %v1120
        %v1124 = vsub.f32 %v634, %v1117
        %v1125 = vsub.f32 %v636, %v1121
        %v1126 = vsub.f32 %v638, %v1117
        %v1127 = vsub.f32 %v640, %v1121
        %v1128 = vsub.f32 %v644, %v1117
        %v1129 = vsub.f32 %v646, %v1121
        %v1130 = vsub.f32 %v648, %v1117
        %v1131 = vsub.f32 %v650, %v1121
        %v1132 = vsub.f32 %v654, %v1117
        %v1133 = vsub.f32 %v656, %v1121
        %v1134 = vsub.f32 %v658, %v1117
        %v1135 = vsub.f32 %v660, %v1121
        %v1136 = vsub.f32 %v664, %v1117
        %v1137 = vsub.f32 %v666, %v1121
        %v1138 = vsub.f32 %v668, %v1117
        %v1139 = vsub.f32 %v670, %v1121
        %v1140 = vsub.f32 %v674, %v1117
        %v1141 = vsub.f32 %v676, %v1121
        %v1142 = vsub.f32 %v678, %v1117
        %v1143 = vsub.f32 %v680, %v1121
        %v1144 = vsub.f32 %v684, %v1117
        %v1145 = vsub.f32 %v686, %v1121
        %v1146 = vsub.f32 %v688, %v1117
        %v1147 = vsub.f32 %v690, %v1121
        %v1148 = vsub.f32 %v694, %v1117
        %v1149 = vsub.f32 %v696, %v1121
        %v1150 = vsub.f32 %v698, %v1117
        %v1151 = vsub.f32 %v700, %v1121
        %v1152 = vsub.f32 %v704, %v1117
        %v1153 = vsub.f32 %v706, %v1121
        %v1154 = vsub.f32 %v708, %v1117
        %v1155 = vsub.f32 %v710, %v1121
        %v1156 = vsub.f32 %v714, %v1117
        %v1157 = vsub.f32 %v716, %v1121
        %v1158 = vsub.f32 %v718, %v1117
        %v1159 = vsub.f32 %v720, %v1121
        %v1160 = vsub.f32 %v724, %v1117
        %v1161 = vsub.f32 %v726, %v1121
        %v1162 = vsub.f32 %v728, %v1117
        %v1163 = vsub.f32 %v730, %v1121
        %v1164 = vsub.f32 %v734, %v1117
        %v1165 = vsub.f32 %v736, %v1121
        %v1166 = vsub.f32 %v738, %v1117
        %v1167 = vsub.f32 %v740, %v1121
        %v1168 = vsub.f32 %v744, %v1117
        %v1169 = vsub.f32 %v746, %v1121
        %v1170 = vsub.f32 %v748, %v1117
        %v1171 = vsub.f32 %v750, %v1121
        %v1172 = vsub.f32 %v754, %v1117
        %v1173 = vsub.f32 %v756, %v1121
        %v1174 = vsub.f32 %v758, %v1117
        %v1175 = vsub.f32 %v760, %v1121
        %v1176 = vsub.f32 %v764, %v1117
        %v1177 = vsub.f32 %v766, %v1121
        %v1178 = vsub.f32 %v768, %v1117
        %v1179 = vsub.f32 %v770, %v1121
        %v1180 = vsub.f32 %v774, %v1117
        %v1181 = vsub.f32 %v776, %v1121
        %v1182 = vsub.f32 %v778, %v1117
        %v1183 = vsub.f32 %v780, %v1121
        %v1184 = vsub.f32 %v784, %v1117
        %v1185 = vsub.f32 %v786, %v1121
        %v1186 = vsub.f32 %v788, %v1117
        %v1187 = vsub.f32 %v790, %v1121
        %v1188 = vsub.f32 %v794, %v1117
        %v1189 = vsub.f32 %v796, %v1121
        %v1190 = vsub.f32 %v798, %v1117
        %v1191 = vsub.f32 %v800, %v1121
        %v1192 = vsub.f32 %v804, %v1117
        %v1193 = vsub.f32 %v806, %v1121
        %v1194 = vsub.f32 %v808, %v1117
        %v1195 = vsub.f32 %v810, %v1121
        %v1196 = vsub.f32 %v814, %v1117
        %v1197 = vsub.f32 %v816, %v1121
        %v1198 = vsub.f32 %v818, %v1117
        %v1199 = vsub.f32 %v820, %v1121
        %v1200 = vsub.f32 %v824, %v1117
        %v1201 = vsub.f32 %v826, %v1121
        %v1202 = vsub.f32 %v828, %v1117
        %v1203 = vsub.f32 %v830, %v1121
        %v1204 = vsub.f32 %v834, %v1117
        %v1205 = vsub.f32 %v836, %v1121
        %v1206 = vsub.f32 %v838, %v1117
        %v1207 = vsub.f32 %v840, %v1121
        %v1208 = vsub.f32 %v844, %v1117
        %v1209 = vsub.f32 %v846, %v1121
        %v1210 = vsub.f32 %v848, %v1117
        %v1211 = vsub.f32 %v850, %v1121
        %v1212 = vsub.f32 %v854, %v1117
        %v1213 = vsub.f32 %v856, %v1121
        %v1214 = vsub.f32 %v858, %v1117
        %v1215 = vsub.f32 %v860, %v1121
        %v1216 = vsub.f32 %v864, %v1117
        %v1217 = vsub.f32 %v866, %v1121
        %v1218 = vsub.f32 %v868, %v1117
        %v1219 = vsub.f32 %v870, %v1121
        %v1220 = vsub.f32 %v874, %v1117
        %v1221 = vsub.f32 %v876, %v1121
        %v1222 = vsub.f32 %v878, %v1117
        %v1223 = vsub.f32 %v880, %v1121
        %v1224 = vsub.f32 %v884, %v1117
        %v1225 = vsub.f32 %v886, %v1121
        %v1226 = vsub.f32 %v888, %v1117
        %v1227 = vsub.f32 %v890, %v1121
        %v1228 = vsub.f32 %v894, %v1117
        %v1229 = vsub.f32 %v896, %v1121
        %v1230 = vsub.f32 %v898, %v1117
        %v1231 = vsub.f32 %v900, %v1121
        %v1232 = vsub.f32 %v904, %v1117
        %v1233 = vsub.f32 %v906, %v1121
        %v1234 = vsub.f32 %v908, %v1117
        %v1235 = vsub.f32 %v910, %v1121
        %v1236 = vsub.f32 %v914, %v1117
        %v1237 = vsub.f32 %v916, %v1121
        %v1238 = vsub.f32 %v918, %v1117
        %v1239 = vsub.f32 %v920, %v1121
        %v1240 = vsub.f32 %v924, %v1117
        %v1241 = vsub.f32 %v926, %v1121
        %v1242 = vsub.f32 %v928, %v1117
        %v1243 = vsub.f32 %v930, %v1121
        %v1244 = vsub.f32 %v934, %v1117
        %v1245 = vsub.f32 %v936, %v1121
        %v1246 = vsub.f32 %v938, %v1117
        %v1247 = vsub.f32 %v940, %v1121
        %v1248 = vsub.f32 %v944, %v1117
        %v1249 = vsub.f32 %v946, %v1121
        %v1250 = vsub.f32 %v948, %v1117
        %v1251 = vsub.f32 %v950, %v1121
        %v1252 = vmul.f32 %v1124, 1.442695
        %v1253 = vpow.pop %v1252
        %v1254 = vmul.f32 %v1125, 1.442695
        %v1255 = vpow.pop %v1254
        %v1256 = vmul.f32 %v1126, 1.442695
        %v1257 = vpow.pop %v1256
        %v1258 = vmul.f32 %v1127, 1.442695
        %v1259 = vpow.pop %v1258
        %v1260 = vmul.f32 %v1128, 1.442695
        %v1261 = vpow.pop %v1260
        %v1262 = vmul.f32 %v1129, 1.442695
        %v1263 = vpow.pop %v1262
        %v1264 = vmul.f32 %v1130, 1.442695
        %v1265 = vpow.pop %v1264
        %v1266 = vmul.f32 %v1131, 1.442695
        %v1267 = vpow.pop %v1266
        %v1268 = vmul.f32 %v1132, 1.442695
        %v1269 = vpow.pop %v1268
        %v1270 = vmul.f32 %v1133, 1.442695
        %v1271 = vpow.pop %v1270
        %v1272 = vmul.f32 %v1134, 1.442695
        %v1273 = vpow.pop %v1272
        %v1274 = vmul.f32 %v1135, 1.442695
        %v1275 = vpow.pop %v1274
        %v1276 = vmul.f32 %v1136, 1.442695
        %v1277 = vpow.pop %v1276
        %v1278 = vmul.f32 %v1137, 1.442695
        %v1279 = vpow.pop %v1278
        %v1280 = vmul.f32 %v1138, 1.442695
        %v1281 = vpow.pop %v1280
        %v1282 = vmul.f32 %v1139, 1.442695
        %v1283 = vpow.pop %v1282
        %v1284 = vmul.f32 %v1140, 1.442695
        %v1285 = vpow.pop %v1284
        %v1286 = vmul.f32 %v1141, 1.442695
        %v1287 = vpow.pop %v1286
        %v1288 = vmul.f32 %v1142, 1.442695
        %v1289 = vpow.pop %v1288
        %v1290 = vmul.f32 %v1143, 1.442695
        %v1291 = vpow.pop %v1290
        %v1292 = vmul.f32 %v1144, 1.442695
        %v1293 = vpow.pop %v1292
        %v1294 = vmul.f32 %v1145, 1.442695
        %v1295 = vpow.pop %v1294
        %v1296 = vmul.f32 %v1146, 1.442695
        %v1297 = vpow.pop %v1296
        %v1298 = vmul.f32 %v1147, 1.442695
        %v1299 = vpow.pop %v1298
        %v1300 = vmul.f32 %v1148, 1.442695
        %v1301 = vpow.pop %v1300
        %v1302 = vmul.f32 %v1149, 1.442695
        %v1303 = vpow.pop %v1302
        %v1304 = vmul.f32 %v1150, 1.442695
        %v1305 = vpow.pop %v1304
        %v1306 = vmul.f32 %v1151, 1.442695
        %v1307 = vpow.pop %v1306
        %v1308 = vmul.f32 %v1152, 1.442695
        %v1309 = vpow.pop %v1308
        %v1310 = vmul.f32 %v1153, 1.442695
        %v1311 = vpow.pop %v1310
        %v1312 = vmul.f32 %v1154, 1.442695
        %v1313 = vpow.pop %v1312
        %v1314 = vmul.f32 %v1155, 1.442695
        %v1315 = vpow.pop %v1314
        %v1316 = vmul.f32 %v1156, 1.442695
        %v1317 = vpow.pop %v1316
        %v1318 = vmul.f32 %v1157, 1.442695
        %v1319 = vpow.pop %v1318
        %v1320 = vmul.f32 %v1158, 1.442695
        %v1321 = vpow.pop %v1320
        %v1322 = vmul.f32 %v1159, 1.442695
        %v1323 = vpow.pop %v1322
        %v1324 = vmul.f32 %v1160, 1.442695
        %v1325 = vpow.pop %v1324
        %v1326 = vmul.f32 %v1161, 1.442695
        %v1327 = vpow.pop %v1326
        %v1328 = vmul.f32 %v1162, 1.442695
        %v1329 = vpow.pop %v1328
        %v1330 = vmul.f32 %v1163, 1.442695
        %v1331 = vpow.pop %v1330
        %v1332 = vmul.f32 %v1164, 1.442695
        %v1333 = vpow.pop %v1332
        %v1334 = vmul.f32 %v1165, 1.442695
        %v1335 = vpow.pop %v1334
        %v1336 = vmul.f32 %v1166, 1.442695
        %v1337 = vpow.pop %v1336
        %v1338 = vmul.f32 %v1167, 1.442695
        %v1339 = vpow.pop %v1338
        %v1340 = vmul.f32 %v1168, 1.442695
        %v1341 = vpow.pop %v1340
        %v1342 = vmul.f32 %v1169, 1.442695
        %v1343 = vpow.pop %v1342
        %v1344 = vmul.f32 %v1170, 1.442695
        %v1345 = vpow.pop %v1344
        %v1346 = vmul.f32 %v1171, 1.442695
        %v1347 = vpow.pop %v1346
        %v1348 = vmul.f32 %v1172, 1.442695
        %v1349 = vpow.pop %v1348
        %v1350 = vmul.f32 %v1173, 1.442695
        %v1351 = vpow.pop %v1350
        %v1352 = vmul.f32 %v1174, 1.442695
        %v1353 = vpow.pop %v1352
        %v1354 = vmul.f32 %v1175, 1.442695
        %v1355 = vpow.pop %v1354
        %v1356 = vmul.f32 %v1176, 1.442695
        %v1357 = vpow.pop %v1356
        %v1358 = vmul.f32 %v1177, 1.442695
        %v1359 = vpow.pop %v1358
        %v1360 = vmul.f32 %v1178, 1.442695
        %v1361 = vpow.pop %v1360
        %v1362 = vmul.f32 %v1179, 1.442695
        %v1363 = vpow.pop %v1362
        %v1364 = vmul.f32 %v1180, 1.442695
        %v1365 = vpow.pop %v1364
        %v1366 = vmul.f32 %v1181, 1.442695
        %v1367 = vpow.pop %v1366
        %v1368 = vmul.f32 %v1182, 1.442695
        %v1369 = vpow.pop %v1368
        %v1370 = vmul.f32 %v1183, 1.442695
        %v1371 = vpow.pop %v1370
        %v1372 = vmul.f32 %v1184, 1.442695
        %v1373 = vpow.pop %v1372
        %v1374 = vmul.f32 %v1185, 1.442695
        %v1375 = vpow.pop %v1374
        %v1376 = vmul.f32 %v1186, 1.442695
        %v1377 = vpow.pop %v1376
        %v1378 = vmul.f32 %v1187, 1.442695
        %v1379 = vpow.pop %v1378
        %v1380 = vmul.f32 %v1188, 1.442695
        %v1381 = vpow.pop %v1380
        %v1382 = vmul.f32 %v1189, 1.442695
        %v1383 = vpow.pop %v1382
        %v1384 = vmul.f32 %v1190, 1.442695
        %v1385 = vpow.pop %v1384
        %v1386 = vmul.f32 %v1191, 1.442695
        %v1387 = vpow.pop %v1386
        %v1388 = vmul.f32 %v1192, 1.442695
        %v1389 = vpow.pop %v1388
        %v1390 = vmul.f32 %v1193, 1.442695
        %v1391 = vpow.pop %v1390
        %v1392 = vmul.f32 %v1194, 1.442695
        %v1393 = vpow.pop %v1392
        %v1394 = vmul.f32 %v1195, 1.442695
        %v1395 = vpow.pop %v1394
        %v1396 = vmul.f32 %v1196, 1.442695
        %v1397 = vpow.pop %v1396
        %v1398 = vmul.f32 %v1197, 1.442695
        %v1399 = vpow.pop %v1398
        %v1400 = vmul.f32 %v1198, 1.442695
        %v1401 = vpow.pop %v1400
        %v1402 = vmul.f32 %v1199, 1.442695
        %v1403 = vpow.pop %v1402
        %v1404 = vmul.f32 %v1200, 1.442695
        %v1405 = vpow.pop %v1404
        %v1406 = vmul.f32 %v1201, 1.442695
        %v1407 = vpow.pop %v1406
        %v1408 = vmul.f32 %v1202, 1.442695
        %v1409 = vpow.pop %v1408
        %v1410 = vmul.f32 %v1203, 1.442695
        %v1411 = vpow.pop %v1410
        %v1412 = vmul.f32 %v1204, 1.442695
        %v1413 = vpow.pop %v1412
        %v1414 = vmul.f32 %v1205, 1.442695
        %v1415 = vpow.pop %v1414
        %v1416 = vmul.f32 %v1206, 1.442695
        %v1417 = vpow.pop %v1416
        %v1418 = vmul.f32 %v1207, 1.442695
        %v1419 = vpow.pop %v1418
        %v1420 = vmul.f32 %v1208, 1.442695
        %v1421 = vpow.pop %v1420
        %v1422 = vmul.f32 %v1209, 1.442695
        %v1423 = vpow.pop %v1422
        %v1424 = vmul.f32 %v1210, 1.442695
        %v1425 = vpow.pop %v1424
        %v1426 = vmul.f32 %v1211, 1.442695
        %v1427 = vpow.pop %v1426
        %v1428 = vmul.f32 %v1212, 1.442695
        %v1429 = vpow.pop %v1428
        %v1430 = vmul.f32 %v1213, 1.442695
        %v1431 = vpow.pop %v1430
        %v1432 = vmul.f32 %v1214, 1.442695
        %v1433 = vpow.pop %v1432
        %v1434 = vmul.f32 %v1215, 1.442695
        %v1435 = vpow.pop %v1434
        %v1436 = vmul.f32 %v1216, 1.442695
        %v1437 = vpow.pop %v1436
        %v1438 = vmul.f32 %v1217, 1.442695
        %v1439 = vpow.pop %v1438
        %v1440 = vmul.f32 %v1218, 1.442695
        %v1441 = vpow.pop %v1440
        %v1442 = vmul.f32 %v1219, 1.442695
        %v1443 = vpow.pop %v1442
        %v1444 = vmul.f32 %v1220, 1.442695
        %v1445 = vpow.pop %v1444
        %v1446 = vmul.f32 %v1221, 1.442695
        %v1447 = vpow.pop %v1446
        %v1448 = vmul.f32 %v1222, 1.442695
        %v1449 = vpow.pop %v1448
        %v1450 = vmul.f32 %v1223, 1.442695
        %v1451 = vpow.pop %v1450
        %v1452 = vmul.f32 %v1224, 1.442695
        %v1453 = vpow.pop %v1452
        %v1454 = vmul.f32 %v1225, 1.442695
        %v1455 = vpow.pop %v1454
        %v1456 = vmul.f32 %v1226, 1.442695
        %v1457 = vpow.pop %v1456
        %v1458 = vmul.f32 %v1227, 1.442695
        %v1459 = vpow.pop %v1458
        %v1460 = vmul.f32 %v1228, 1.442695
        %v1461 = vpow.pop %v1460
        %v1462 = vmul.f32 %v1229, 1.442695
        %v1463 = vpow.pop %v1462
        %v1464 = vmul.f32 %v1230, 1.442695
        %v1465 = vpow.pop %v1464
        %v1466 = vmul.f32 %v1231, 1.442695
        %v1467 = vpow.pop %v1466
        %v1468 = vmul.f32 %v1232, 1.442695
        %v1469 = vpow.pop %v1468
        %v1470 = vmul.f32 %v1233, 1.442695
        %v1471 = vpow.pop %v1470
        %v1472 = vmul.f32 %v1234, 1.442695
        %v1473 = vpow.pop %v1472
        %v1474 = vmul.f32 %v1235, 1.442695
        %v1475 = vpow.pop %v1474
        %v1476 = vmul.f32 %v1236, 1.442695
        %v1477 = vpow.pop %v1476
        %v1478 = vmul.f32 %v1237, 1.442695
        %v1479 = vpow.pop %v1478
        %v1480 = vmul.f32 %v1238, 1.442695
        %v1481 = vpow.pop %v1480
        %v1482 = vmul.f32 %v1239, 1.442695
        %v1483 = vpow.pop %v1482
        %v1484 = vmul.f32 %v1240, 1.442695
        %v1485 = vpow.pop %v1484
        %v1486 = vmul.f32 %v1241, 1.442695
        %v1487 = vpow.pop %v1486
        %v1488 = vmul.f32 %v1242, 1.442695
        %v1489 = vpow.pop %v1488
        %v1490 = vmul.f32 %v1243, 1.442695
        %v1491 = vpow.pop %v1490
        %v1492 = vmul.f32 %v1244, 1.442695
        %v1493 = vpow.pop %v1492
        %v1494 = vmul.f32 %v1245, 1.442695
        %v1495 = vpow.pop %v1494
        %v1496 = vmul.f32 %v1246, 1.442695
        %v1497 = vpow.pop %v1496
        %v1498 = vmul.f32 %v1247, 1.442695
        %v1499 = vpow.pop %v1498
        %v1500 = vmul.f32 %v1248, 1.442695
        %v1501 = vpow.pop %v1500
        %v1502 = vmul.f32 %v1249, 1.442695
        %v1503 = vpow.pop %v1502
        %v1504 = vmul.f32 %v1250, 1.442695
        %v1505 = vpow.pop %v1504
        %v1506 = vmul.f32 %v1251, 1.442695
        %v1507 = vpow.pop %v1506
        %v1508 = vld [vmem:[#allocation3] sm:$0x3]
        %v1509 = vmul.f32 %v1112, %v1508
        %v1510 = vadd.f32 %v1253, %v1257
        %v1511 = vadd.f32 %v1510, %v1261
        %v1512 = vadd.f32 %v1511, %v1265
        %v1513 = vadd.f32 %v1512, %v1269
        %v1514 = vadd.f32 %v1513, %v1273
        %v1515 = vadd.f32 %v1514, %v1277
        %v1516 = vadd.f32 %v1515, %v1281
        %v1517 = vadd.f32 %v1516, %v1285
        %v1518 = vadd.f32 %v1517, %v1289
        %v1519 = vadd.f32 %v1518, %v1293
        %v1520 = vadd.f32 %v1519, %v1297
        %v1521 = vadd.f32 %v1520, %v1301
        %v1522 = vadd.f32 %v1521, %v1305
        %v1523 = vadd.f32 %v1522, %v1309
        %v1524 = vadd.f32 %v1523, %v1313
        %v1525 = vadd.f32 %v1524, %v1317
        %v1526 = vadd.f32 %v1525, %v1321
        %v1527 = vadd.f32 %v1526, %v1325
        %v1528 = vadd.f32 %v1527, %v1329
        %v1529 = vadd.f32 %v1528, %v1333
        %v1530 = vadd.f32 %v1529, %v1337
        %v1531 = vadd.f32 %v1530, %v1341
        %v1532 = vadd.f32 %v1531, %v1345
        %v1533 = vadd.f32 %v1532, %v1349
        %v1534 = vadd.f32 %v1533, %v1353
        %v1535 = vadd.f32 %v1534, %v1357
        %v1536 = vadd.f32 %v1535, %v1361
        %v1537 = vadd.f32 %v1536, %v1365
        %v1538 = vadd.f32 %v1537, %v1369
        %v1539 = vadd.f32 %v1538, %v1373
        %v1540 = vadd.f32 %v1539, %v1377
        %v1541 = vadd.f32 %v1540, %v1381
        %v1542 = vadd.f32 %v1541, %v1385
        %v1543 = vadd.f32 %v1542, %v1389
        %v1544 = vadd.f32 %v1543, %v1393
        %v1545 = vadd.f32 %v1544, %v1397
        %v1546 = vadd.f32 %v1545, %v1401
        %v1547 = vadd.f32 %v1546, %v1405
        %v1548 = vadd.f32 %v1547, %v1409
        %v1549 = vadd.f32 %v1548, %v1413
        %v1550 = vadd.f32 %v1549, %v1417
        %v1551 = vadd.f32 %v1550, %v1421
        %v1552 = vadd.f32 %v1551, %v1425
        %v1553 = vadd.f32 %v1552, %v1429
        %v1554 = vadd.f32 %v1553, %v1433
        %v1555 = vadd.f32 %v1554, %v1437
        %v1556 = vadd.f32 %v1555, %v1441
        %v1557 = vadd.f32 %v1556, %v1445
        %v1558 = vadd.f32 %v1557, %v1449
        %v1559 = vadd.f32 %v1558, %v1453
        %v1560 = vadd.f32 %v1559, %v1457
        %v1561 = vadd.f32 %v1560, %v1461
        %v1562 = vadd.f32 %v1561, %v1465
        %v1563 = vadd.f32 %v1562, %v1469
        %v1564 = vadd.f32 %v1563, %v1473
        %v1565 = vadd.f32 %v1564, %v1477
        %v1566 = vadd.f32 %v1565, %v1481
        %v1567 = vadd.f32 %v1566, %v1485
        %v1568 = vadd.f32 %v1567, %v1489
        %v1569 = vadd.f32 %v1568, %v1493
        %v1570 = vadd.f32 %v1569, %v1497
        %v1571 = vadd.f32 %v1570, %v1501
        %v1572 = vadd.f32 %v1571, %v1505
        %v1573 = vrot.slane %v1572, 4
        %v1574 = vadd.f32 %v1572, %v1573
        %v1575 = vrot.slane %v1574, 2
        %v1576 = vadd.f32 %v1574, %v1575
        %v1577 = vrot.slane %v1576, 1
        %v1578 = vadd.f32 %v1576, %v1577
        %v1579 = vadd.f32 %v1255, %v1259
        %v1580 = vadd.f32 %v1579, %v1263
        %v1581 = vadd.f32 %v1580, %v1267
        %v1582 = vadd.f32 %v1581, %v1271
        %v1583 = vadd.f32 %v1582, %v1275
        %v1584 = vadd.f32 %v1583, %v1279
        %v1585 = vadd.f32 %v1584, %v1283
        %v1586 = vadd.f32 %v1585, %v1287
        %v1587 = vadd.f32 %v1586, %v1291
        %v1588 = vadd.f32 %v1587, %v1295
        %v1589 = vadd.f32 %v1588, %v1299
        %v1590 = vadd.f32 %v1589, %v1303
        %v1591 = vadd.f32 %v1590, %v1307
        %v1592 = vadd.f32 %v1591, %v1311
        %v1593 = vadd.f32 %v1592, %v1315
        %v1594 = vadd.f32 %v1593, %v1319
        %v1595 = vadd.f32 %v1594, %v1323
        %v1596 = vadd.f32 %v1595, %v1327
        %v1597 = vadd.f32 %v1596, %v1331
        %v1598 = vadd.f32 %v1597, %v1335
        %v1599 = vadd.f32 %v1598, %v1339
        %v1600 = vadd.f32 %v1599, %v1343
        %v1601 = vadd.f32 %v1600, %v1347
        %v1602 = vadd.f32 %v1601, %v1351
        %v1603 = vadd.f32 %v1602, %v1355
        %v1604 = vadd.f32 %v1603, %v1359
        %v1605 = vadd.f32 %v1604, %v1363
        %v1606 = vadd.f32 %v1605, %v1367
        %v1607 = vadd.f32 %v1606, %v1371
        %v1608 = vadd.f32 %v1607, %v1375
        %v1609 = vadd.f32 %v1608, %v1379
        %v1610 = vadd.f32 %v1609, %v1383
        %v1611 = vadd.f32 %v1610, %v1387
        %v1612 = vadd.f32 %v1611, %v1391
        %v1613 = vadd.f32 %v1612, %v1395
        %v1614 = vadd.f32 %v1613, %v1399
        %v1615 = vadd.f32 %v1614, %v1403
        %v1616 = vadd.f32 %v1615, %v1407
        %v1617 = vadd.f32 %v1616, %v1411
        %v1618 = vadd.f32 %v1617, %v1415
        %v1619 = vadd.f32 %v1618, %v1419
        %v1620 = vadd.f32 %v1619, %v1423
        %v1621 = vadd.f32 %v1620, %v1427
        %v1622 = vadd.f32 %v1621, %v1431
        %v1623 = vadd.f32 %v1622, %v1435
        %v1624 = vadd.f32 %v1623, %v1439
        %v1625 = vadd.f32 %v1624, %v1443
        %v1626 = vadd.f32 %v1625, %v1447
        %v1627 = vadd.f32 %v1626, %v1451
        %v1628 = vadd.f32 %v1627, %v1455
        %v1629 = vadd.f32 %v1628, %v1459
        %v1630 = vadd.f32 %v1629, %v1463
        %v1631 = vadd.f32 %v1630, %v1467
        %v1632 = vadd.f32 %v1631, %v1471
        %v1633 = vadd.f32 %v1632, %v1475
        %v1634 = vadd.f32 %v1633, %v1479
        %v1635 = vadd.f32 %v1634, %v1483
        %v1636 = vadd.f32 %v1635, %v1487
        %v1637 = vadd.f32 %v1636, %v1491
        %v1638 = vadd.f32 %v1637, %v1495
        %v1639 = vadd.f32 %v1638, %v1499
        %v1640 = vadd.f32 %v1639, %v1503
        %v1641 = vadd.f32 %v1640, %v1507
        %v1642 = vrot.slane %v1641, 4
        %v1643 = vadd.f32 %v1641, %v1642
        %v1644 = vrot.slane %v1643, 2
        %v1645 = vadd.f32 %v1643, %v1644
        %v1646 = vrot.slane %v1645, 1
        %v1647 = vadd.f32 %v1645, %v1646
        %v1650 = vcombine.low %v1578, %v1647
        %v1652 = vunpack.c.l.s4 1966171168
        %v1653 = vunpack.c.0.s8 %v1652
        %v1654 = vlaneseq
        %v1655 = vshrl.u32 %v1654, 7
        %v1656 = vsub.s32 %v1653, %v1655
        %v1657 = vrot.slane %v1650, %v1656
        %v1659 = vunpack.c.l.s4 1966171168
        %v1660 = vunpack.c.0.s8 %v1659
        %v1661 = vlaneseq
        %v1662 = vshrl.u32 %v1661, 7
        %v1663 = vsub.s32 %v1660, %v1662
        %v1664 = vrot.slane %v1657, %v1663
        %v1666 = vadd.f32 %v1509, %v1664
        %v1667 = vlaneseq
        %vm1668 = vcmp.ge.s32.totalorder %v1667, 0
        %vm1669 = vcmp.lt.s32.totalorder %v1667, 256
        %vm1670 = vmand %vm1668, %vm1669
        %1671 = vst.msk [vmem:[#allocation3] sm:$0x3] %vm1670, %v1666
        %1672 = vst.msk [vmem:[#allocation2] sm:$0x3] %vm1670, %v1109
        %v1673 = vld [vmem:[%s298] sm:$0xff]
        %v1674 = vld [vmem:[%s298 + $0x8] sm:$0xff]
        %v1675 = vld [vmem:[%s298 + $0x10] sm:$0xff]
        %v1676 = vld [vmem:[%s298 + $0x18] sm:$0xff]
        %v1677 = vld [vmem:[%s298 + $0x20] sm:$0xff]
        %v1678 = vld [vmem:[%s298 + $0x28] sm:$0xff]
        %v1679 = vld [vmem:[%s298 + $0x30] sm:$0xff]
        %v1680 = vld [vmem:[%s298 + $0x38] sm:$0xff]
        %v1681 = vld [vmem:[%s298 + $0x40] sm:$0xff]
        %v1682 = vld [vmem:[%s298 + $0x48] sm:$0xff]
        %v1683 = vld [vmem:[%s298 + $0x50] sm:$0xff]
        %v1684 = vld [vmem:[%s298 + $0x58] sm:$0xff]
        %v1685 = vld [vmem:[%s298 + $0x60] sm:$0xff]
        %v1686 = vld [vmem:[%s298 + $0x68] sm:$0xff]
        %v1687 = vld [vmem:[%s298 + $0x70] sm:$0xff]
        %v1688 = vld [vmem:[%s298 + $0x78] sm:$0xff]
        %v1690 = vlaneseq
        %v1691 = vshrl.u32 %v1690, 7
        %v1692 = vsub.s32 0, %v1691
        %v1693 = vrot.slane %v1112, %v1692
        %v1694 = vlaneseq
        %v1695 = vshrl.u32 %v1694, 7
        %v1696 = vsub.s32 1, %v1695
        %v1697 = vrot.slane %v1112, %v1696
        %v1700 = vmul.f32 %v1693, %v1673
        %v1701 = vmul.f32 %v1697, %v1674
        %v1702 = vmul.f32 %v1693, %v1675
        %v1703 = vmul.f32 %v1697, %v1676
        %v1704 = vmul.f32 %v1693, %v1677
        %v1705 = vmul.f32 %v1697, %v1678
        %v1706 = vmul.f32 %v1693, %v1679
        %v1707 = vmul.f32 %v1697, %v1680
        %v1708 = vmul.f32 %v1693, %v1681
        %v1709 = vmul.f32 %v1697, %v1682
        %v1710 = vmul.f32 %v1693, %v1683
        %v1711 = vmul.f32 %v1697, %v1684
        %v1712 = vmul.f32 %v1693, %v1685
        %v1713 = vmul.f32 %v1697, %v1686
        %v1714 = vmul.f32 %v1693, %v1687
        %v1715 = vmul.f32 %v1697, %v1688
        %v1716 = vld [vmem:[%s266] sm:$0xff]
        %v1717 = vld [vmem:[%s266 + $0x8] sm:$0xff]
        %v1718 = vld [vmem:[%s266 + $0x10] sm:$0xff]
        %v1719 = vld [vmem:[%s266 + $0x18] sm:$0xff]
        %v1720 = vld [vmem:[%s266 + $0x20] sm:$0xff]
        %v1721 = vld [vmem:[%s266 + $0x28] sm:$0xff]
        %v1722 = vld [vmem:[%s266 + $0x30] sm:$0xff]
        %v1723 = vld [vmem:[%s266 + $0x38] sm:$0xff]
        %v1724 = vld [vmem:[%s266 + $0x40] sm:$0xff]
        %v1725 = vld [vmem:[%s266 + $0x48] sm:$0xff]
        %v1726 = vld [vmem:[%s266 + $0x50] sm:$0xff]
        %v1727 = vld [vmem:[%s266 + $0x58] sm:$0xff]
        %v1728 = vld [vmem:[%s266 + $0x60] sm:$0xff]
        %v1729 = vld [vmem:[%s266 + $0x68] sm:$0xff]
        %v1730 = vld [vmem:[%s266 + $0x70] sm:$0xff]
        %v1731 = vld [vmem:[%s266 + $0x78] sm:$0xff]
        %v1732 = vpack.c.bf16 %v1257, %v1253
        %v1733 = vpack.c.bf16 %v1259, %v1255
        %v1734 = vpack.c.bf16 %v1265, %v1261
        %v1735 = vpack.c.bf16 %v1267, %v1263
        %v1736 = vpack.c.bf16 %v1273, %v1269
        %v1737 = vpack.c.bf16 %v1275, %v1271
        %v1738 = vpack.c.bf16 %v1281, %v1277
        %v1739 = vpack.c.bf16 %v1283, %v1279
        %v1740 = vpack.c.bf16 %v1289, %v1285
        %v1741 = vpack.c.bf16 %v1291, %v1287
        %v1742 = vpack.c.bf16 %v1297, %v1293
        %v1743 = vpack.c.bf16 %v1299, %v1295
        %v1744 = vpack.c.bf16 %v1305, %v1301
        %v1745 = vpack.c.bf16 %v1307, %v1303
        %v1746 = vpack.c.bf16 %v1313, %v1309
        %v1747 = vpack.c.bf16 %v1315, %v1311
        %v1748 = vpack.c.bf16 %v1321, %v1317
        %v1749 = vpack.c.bf16 %v1323, %v1319
        %v1750 = vpack.c.bf16 %v1329, %v1325
        %v1751 = vpack.c.bf16 %v1331, %v1327
        %v1752 = vpack.c.bf16 %v1337, %v1333
        %v1753 = vpack.c.bf16 %v1339, %v1335
        %v1754 = vpack.c.bf16 %v1345, %v1341
        %v1755 = vpack.c.bf16 %v1347, %v1343
        %v1756 = vpack.c.bf16 %v1353, %v1349
        %v1757 = vpack.c.bf16 %v1355, %v1351
        %v1758 = vpack.c.bf16 %v1361, %v1357
        %v1759 = vpack.c.bf16 %v1363, %v1359
        %v1760 = vpack.c.bf16 %v1369, %v1365
        %v1761 = vpack.c.bf16 %v1371, %v1367
        %v1762 = vpack.c.bf16 %v1377, %v1373
        %v1763 = vpack.c.bf16 %v1379, %v1375
        %v1764 = vpack.c.bf16 %v1385, %v1381
        %v1765 = vpack.c.bf16 %v1387, %v1383
        %v1766 = vpack.c.bf16 %v1393, %v1389
        %v1767 = vpack.c.bf16 %v1395, %v1391
        %v1768 = vpack.c.bf16 %v1401, %v1397
        %v1769 = vpack.c.bf16 %v1403, %v1399
        %v1770 = vpack.c.bf16 %v1409, %v1405
        %v1771 = vpack.c.bf16 %v1411, %v1407
        %v1772 = vpack.c.bf16 %v1417, %v1413
        %v1773 = vpack.c.bf16 %v1419, %v1415
        %v1774 = vpack.c.bf16 %v1425, %v1421
        %v1775 = vpack.c.bf16 %v1427, %v1423
        %v1776 = vpack.c.bf16 %v1433, %v1429
        %v1777 = vpack.c.bf16 %v1435, %v1431
        %v1778 = vpack.c.bf16 %v1441, %v1437
        %v1779 = vpack.c.bf16 %v1443, %v1439
        %v1780 = vpack.c.bf16 %v1449, %v1445
        %v1781 = vpack.c.bf16 %v1451, %v1447
        %v1782 = vpack.c.bf16 %v1457, %v1453
        %v1783 = vpack.c.bf16 %v1459, %v1455
        %v1784 = vpack.c.bf16 %v1465, %v1461
        %v1785 = vpack.c.bf16 %v1467, %v1463
        %v1786 = vpack.c.bf16 %v1473, %v1469
        %v1787 = vpack.c.bf16 %v1475, %v1471
        %v1788 = vpack.c.bf16 %v1481, %v1477
        %v1789 = vpack.c.bf16 %v1483, %v1479
        %v1790 = vpack.c.bf16 %v1489, %v1485
        %v1791 = vpack.c.bf16 %v1491, %v1487
        %v1792 = vpack.c.bf16 %v1497, %v1493
        %v1793 = vpack.c.bf16 %v1499, %v1495
        %v1794 = vpack.c.bf16 %v1505, %v1501
        %v1795 = vpack.c.bf16 %v1507, %v1503
        %v1812 = vunpack.c.l.b16 %v1716
        %v1813 = vunpack.c.h.b16 %v1716
        %v1814 = vunpack.c.l.b16 %v1717
        %v1815 = vunpack.c.h.b16 %v1717
        %v1816 = vunpack.c.l.b16 %v1718
        %v1817 = vunpack.c.h.b16 %v1718
        %v1818 = vunpack.c.l.b16 %v1719
        %v1819 = vunpack.c.h.b16 %v1719
        %v1820 = vunpack.c.l.b16 %v1720
        %v1821 = vunpack.c.h.b16 %v1720
        %v1822 = vunpack.c.l.b16 %v1721
        %v1823 = vunpack.c.h.b16 %v1721
        %v1824 = vunpack.c.l.b16 %v1722
        %v1825 = vunpack.c.h.b16 %v1722
        %v1826 = vunpack.c.l.b16 %v1723
        %v1827 = vunpack.c.h.b16 %v1723
        %v1828 = vunpack.c.l.b16 %v1724
        %v1829 = vunpack.c.h.b16 %v1724
        %v1830 = vunpack.c.l.b16 %v1725
        %v1831 = vunpack.c.h.b16 %v1725
        %v1832 = vunpack.c.l.b16 %v1726
        %v1833 = vunpack.c.h.b16 %v1726
        %v1834 = vunpack.c.l.b16 %v1727
        %v1835 = vunpack.c.h.b16 %v1727
        %v1836 = vunpack.c.l.b16 %v1728
        %v1837 = vunpack.c.h.b16 %v1728
        %v1838 = vunpack.c.l.b16 %v1729
        %v1839 = vunpack.c.h.b16 %v1729
        %v1840 = vunpack.c.l.b16 %v1730
        %v1841 = vunpack.c.h.b16 %v1730
        %v1842 = vunpack.c.l.b16 %v1731
        %v1843 = vunpack.c.h.b16 %v1731
        %v1844 = vpack.c.b16 %v1816, %v1812
        %v1845 = vpack.c.b16 %v1817, %v1813
        %v1846 = vpack.c.b16 %v1818, %v1814
        %v1847 = vpack.c.b16 %v1819, %v1815
        %v1848 = vpack.c.b16 %v1824, %v1820
        %v1849 = vpack.c.b16 %v1825, %v1821
        %v1850 = vpack.c.b16 %v1826, %v1822
        %v1851 = vpack.c.b16 %v1827, %v1823
        %v1852 = vpack.c.b16 %v1832, %v1828
        %v1853 = vpack.c.b16 %v1833, %v1829
        %v1854 = vpack.c.b16 %v1834, %v1830
        %v1855 = vpack.c.b16 %v1835, %v1831
        %v1856 = vpack.c.b16 %v1840, %v1836
        %v1857 = vpack.c.b16 %v1841, %v1837
        %v1858 = vpack.c.b16 %v1842, %v1838
        %v1859 = vpack.c.b16 %v1843, %v1839
        %1876 = vmatprep.subr.bf16.mxu0 %v1733
        %1877 = vmatpush1.bf16.msra.mxu0 %v1732
        %1878 = vmatprep.subr.bf16.mxu0 %v1735
        %1879 = vmatpush1.bf16.msra.mxu0 %v1734
        %1880 = vmatprep.subr.bf16.mxu0 %v1737
        %1881 = vmatpush1.bf16.msra.mxu0 %v1736
        %1882 = vmatprep.subr.bf16.mxu0 %v1739
        %1883 = vmatpush1.bf16.msra.mxu0 %v1738
        %1884 = vmatprep.subr.bf16.mxu0 %v1741
        %1885 = vmatpush1.bf16.msra.mxu0 %v1740
        %1886 = vmatprep.subr.bf16.mxu0 %v1743
        %1887 = vmatpush1.bf16.msra.mxu0 %v1742
        %1888 = vmatprep.subr.bf16.mxu0 %v1745
        %1889 = vmatpush1.bf16.msra.mxu0 %v1744
        %1890 = vmatprep.subr.bf16.mxu0 %v1747
        %1891 = vmatpush1.bf16.msra.mxu0 %v1746
        %1892 = vmatprep.subr.bf16.mxu0 %v1749
        %1893 = vmatpush1.bf16.msra.mxu0 %v1748
        %1894 = vmatprep.subr.bf16.mxu0 %v1751
        %1895 = vmatpush1.bf16.msra.mxu0 %v1750
        %1896 = vmatprep.subr.bf16.mxu0 %v1753
        %1897 = vmatpush1.bf16.msra.mxu0 %v1752
        %1898 = vmatprep.subr.bf16.mxu0 %v1755
        %1899 = vmatpush1.bf16.msra.mxu0 %v1754
        %1900 = vmatprep.subr.bf16.mxu0 %v1757
        %1901 = vmatpush1.bf16.msra.mxu0 %v1756
        %1902 = vmatprep.subr.bf16.mxu0 %v1759
        %1903 = vmatpush1.bf16.msra.mxu0 %v1758
        %1904 = vmatprep.subr.bf16.mxu0 %v1761
        %1905 = vmatpush1.bf16.msra.mxu0 %v1760
        %1906 = vmatprep.subr.bf16.mxu0 %v1763
        %1907 = vmatpush1.bf16.msra.mxu0 %v1762
        %1908 = vmatprep.mubr.bf16.mxu0 %v1845
        %1909 = vmatmul.mubr.bf16.gmra.mrb[0].mxu0 %v1844
        %v1910 = vpop.f32.mrb[0].mxu0
        %v1911 = vadd.f32 0.0, %v1910
        %v1912 = vpop.f32.mrb[0].mxu0
        %v1913 = vadd.f32 0.0, %v1912
        %v1914 = vpop.f32.mrb[0].mxu0
        %v1915 = vadd.f32 0.0, %v1914
        %v1916 = vpop.f32.mrb[0].mxu0
        %v1917 = vadd.f32 0.0, %v1916
        %1918 = vmatprep.mubr.bf16.mxu0 %v1849
        %1919 = vmatmul.mubr.bf16.gmra.mrb[0].mxu0 %v1848
        %v1920 = vpop.f32.mrb[0].mxu0
        %v1921 = vadd.f32 0.0, %v1920
        %v1922 = vpop.f32.mrb[0].mxu0
        %v1923 = vadd.f32 0.0, %v1922
        %v1924 = vpop.f32.mrb[0].mxu0
        %v1925 = vadd.f32 0.0, %v1924
        %v1926 = vpop.f32.mrb[0].mxu0
        %v1927 = vadd.f32 0.0, %v1926
        %1928 = vmatprep.mubr.bf16.mxu0 %v1853
        %1929 = vmatmul.mubr.bf16.gmra.mrb[0].mxu0 %v1852
        %v1930 = vpop.f32.mrb[0].mxu0
        %v1931 = vadd.f32 0.0, %v1930
        %v1932 = vpop.f32.mrb[0].mxu0
        %v1933 = vadd.f32 0.0, %v1932
        %v1934 = vpop.f32.mrb[0].mxu0
        %v1935 = vadd.f32 0.0, %v1934
        %v1936 = vpop.f32.mrb[0].mxu0
        %v1937 = vadd.f32 0.0, %v1936
        %1938 = vmatprep.mubr.bf16.mxu0 %v1857
        %1939 = vmatmul.mubr.bf16.gmra.mrb[0].mxu0 %v1856
        %v1940 = vpop.f32.mrb[0].mxu0
        %v1941 = vadd.f32 0.0, %v1940
        %v1942 = vpop.f32.mrb[0].mxu0
        %v1943 = vadd.f32 0.0, %v1942
        %v1944 = vpop.f32.mrb[0].mxu0
        %v1945 = vadd.f32 0.0, %v1944
        %v1946 = vpop.f32.mrb[0].mxu0
        %v1947 = vadd.f32 0.0, %v1946
        %1948 = vdwg.mxu0
        %1949 = vmatprep.subr.bf16.mxu0 %v1765
        %1950 = vmatpush1.bf16.msra.mxu0 %v1764
        %1951 = vmatprep.subr.bf16.mxu0 %v1767
        %1952 = vmatpush1.bf16.msra.mxu0 %v1766
        %1953 = vmatprep.subr.bf16.mxu0 %v1769
        %1954 = vmatpush1.bf16.msra.mxu0 %v1768
        %1955 = vmatprep.subr.bf16.mxu0 %v1771
        %1956 = vmatpush1.bf16.msra.mxu0 %v1770
        %1957 = vmatprep.subr.bf16.mxu0 %v1773
        %1958 = vmatpush1.bf16.msra.mxu0 %v1772
        %1959 = vmatprep.subr.bf16.mxu0 %v1775
        %1960 = vmatpush1.bf16.msra.mxu0 %v1774
        %1961 = vmatprep.subr.bf16.mxu0 %v1777
        %1962 = vmatpush1.bf16.msra.mxu0 %v1776
        %1963 = vmatprep.subr.bf16.mxu0 %v1779
        %1964 = vmatpush1.bf16.msra.mxu0 %v1778
        %1965 = vmatprep.subr.bf16.mxu0 %v1781
        %1966 = vmatpush1.bf16.msra.mxu0 %v1780
        %1967 = vmatprep.subr.bf16.mxu0 %v1783
        %1968 = vmatpush1.bf16.msra.mxu0 %v1782
        %1969 = vmatprep.subr.bf16.mxu0 %v1785
        %1970 = vmatpush1.bf16.msra.mxu0 %v1784
        %1971 = vmatprep.subr.bf16.mxu0 %v1787
        %1972 = vmatpush1.bf16.msra.mxu0 %v1786
        %1973 = vmatprep.subr.bf16.mxu0 %v1789
        %1974 = vmatpush1.bf16.msra.mxu0 %v1788
        %1975 = vmatprep.subr.bf16.mxu0 %v1791
        %1976 = vmatpush1.bf16.msra.mxu0 %v1790
        %1977 = vmatprep.subr.bf16.mxu0 %v1793
        %1978 = vmatpush1.bf16.msra.mxu0 %v1792
        %1979 = vmatprep.subr.bf16.mxu0 %v1795
        %1980 = vmatpush1.bf16.msra.mxu0 %v1794
        %1981 = vmatprep.mubr.bf16.mxu0 %v1847
        %1982 = vmatmul.mubr.bf16.gmra.mrb[0].mxu0 %v1846
        %v1983 = vpop.f32.mrb[0].mxu0
        %v1984 = vadd.f32 %v1911, %v1983
        %v1985 = vpop.f32.mrb[0].mxu0
        %v1986 = vadd.f32 %v1913, %v1985
        %v1987 = vpop.f32.mrb[0].mxu0
        %v1988 = vadd.f32 %v1915, %v1987
        %v1989 = vpop.f32.mrb[0].mxu0
        %v1990 = vadd.f32 %v1917, %v1989
        %1991 = vmatprep.mubr.bf16.mxu0 %v1851
        %1992 = vmatmul.mubr.bf16.gmra.mrb[0].mxu0 %v1850
        %v1993 = vpop.f32.mrb[0].mxu0
        %v1994 = vadd.f32 %v1921, %v1993
        %v1995 = vpop.f32.mrb[0].mxu0
        %v1996 = vadd.f32 %v1923, %v1995
        %v1997 = vpop.f32.mrb[0].mxu0
        %v1998 = vadd.f32 %v1925, %v1997
        %v1999 = vpop.f32.mrb[0].mxu0
        %v2000 = vadd.f32 %v1927, %v1999
        %2001 = vmatprep.mubr.bf16.mxu0 %v1855
        %2002 = vmatmul.mubr.bf16.gmra.mrb[0].mxu0 %v1854
        %v2003 = vpop.f32.mrb[0].mxu0
        %v2004 = vadd.f32 %v1931, %v2003
        %v2005 = vpop.f32.mrb[0].mxu0
        %v2006 = vadd.f32 %v1933, %v2005
        %v2007 = vpop.f32.mrb[0].mxu0
        %v2008 = vadd.f32 %v1935, %v2007
        %v2009 = vpop.f32.mrb[0].mxu0
        %v2010 = vadd.f32 %v1937, %v2009
        %2011 = vmatprep.mubr.bf16.mxu0 %v1859
        %2012 = vmatmul.mubr.bf16.gmra.mrb[0].mxu0 %v1858
        %v2013 = vpop.f32.mrb[0].mxu0
        %v2014 = vadd.f32 %v1941, %v2013
        %v2015 = vpop.f32.mrb[0].mxu0
        %v2016 = vadd.f32 %v1943, %v2015
        %v2017 = vpop.f32.mrb[0].mxu0
        %v2018 = vadd.f32 %v1945, %v2017
        %v2019 = vpop.f32.mrb[0].mxu0
        %v2020 = vadd.f32 %v1947, %v2019
        %2021 = vdwg.mxu0
        %v2022 = vadd.f32 %v1700, %v1984
        %v2023 = vadd.f32 %v1701, %v1986
        %v2024 = vadd.f32 %v1702, %v1988
        %v2025 = vadd.f32 %v1703, %v1990
        %v2026 = vadd.f32 %v1704, %v1994
        %v2027 = vadd.f32 %v1705, %v1996
        %v2028 = vadd.f32 %v1706, %v1998
        %v2029 = vadd.f32 %v1707, %v2000
        %v2030 = vadd.f32 %v1708, %v2004
        %v2031 = vadd.f32 %v1709, %v2006
        %v2032 = vadd.f32 %v1710, %v2008
        %v2033 = vadd.f32 %v1711, %v2010
        %v2034 = vadd.f32 %v1712, %v2014
        %v2035 = vadd.f32 %v1713, %v2016
        %v2036 = vadd.f32 %v1714, %v2018
        %v2037 = vadd.f32 %v1715, %v2020
        %2038 = vst [vmem:[%s298] sm:$0xff] %v2022
        %2039 = vst [vmem:[%s298 + $0x8] sm:$0xff] %v2023
        %2040 = vst [vmem:[%s298 + $0x10] sm:$0xff] %v2024
        %2041 = vst [vmem:[%s298 + $0x18] sm:$0xff] %v2025
        %2042 = vst [vmem:[%s298 + $0x20] sm:$0xff] %v2026
        %2043 = vst [vmem:[%s298 + $0x28] sm:$0xff] %v2027
        %2044 = vst [vmem:[%s298 + $0x30] sm:$0xff] %v2028
        %2045 = vst [vmem:[%s298 + $0x38] sm:$0xff] %v2029
        %2046 = vst [vmem:[%s298 + $0x40] sm:$0xff] %v2030
        %2047 = vst [vmem:[%s298 + $0x48] sm:$0xff] %v2031
        %2048 = vst [vmem:[%s298 + $0x50] sm:$0xff] %v2032
        %2049 = vst [vmem:[%s298 + $0x58] sm:$0xff] %v2033
        %2050 = vst [vmem:[%s298 + $0x60] sm:$0xff] %v2034
        %2051 = vst [vmem:[%s298 + $0x68] sm:$0xff] %v2035
        %2052 = vst [vmem:[%s298 + $0x70] sm:$0xff] %v2036
        %2053 = vst [vmem:[%s298 + $0x78] sm:$0xff] %v2037
        %p2054 = scmp.eq.s32.totalorder %s30, 1
        // Predicated region
        $region49: #{tpu_custom_call.1} parent=31 // pred_check
          %p2055 = pneg %p2054
        $region50: #{tpu_custom_call.1} parent=31 // pred_check_branch
          %2057 = sbr.rel (%p2055) target = $region52
        $region51: #{tpu_custom_call.1} parent=31 // pred_region
          %v2058 = vld [vmem:[%s298] sm:$0xff]
          %v2059 = vld [vmem:[%s298 + $0x8] sm:$0xff]
          %v2060 = vld [vmem:[%s298 + $0x10] sm:$0xff]
          %v2061 = vld [vmem:[%s298 + $0x18] sm:$0xff]
          %v2062 = vld [vmem:[%s298 + $0x20] sm:$0xff]
          %v2063 = vld [vmem:[%s298 + $0x28] sm:$0xff]
          %v2064 = vld [vmem:[%s298 + $0x30] sm:$0xff]
          %v2065 = vld [vmem:[%s298 + $0x38] sm:$0xff]
          %v2066 = vld [vmem:[%s298 + $0x40] sm:$0xff]
          %v2067 = vld [vmem:[%s298 + $0x48] sm:$0xff]
          %v2068 = vld [vmem:[%s298 + $0x50] sm:$0xff]
          %v2069 = vld [vmem:[%s298 + $0x58] sm:$0xff]
          %v2070 = vld [vmem:[%s298 + $0x60] sm:$0xff]
          %v2071 = vld [vmem:[%s298 + $0x68] sm:$0xff]
          %v2072 = vld [vmem:[%s298 + $0x70] sm:$0xff]
          %v2073 = vld [vmem:[%s298 + $0x78] sm:$0xff]
          %v2074 = vld [vmem:[#allocation3] sm:$0x3]
          %v2075 = vrcp.pop %v2074
          %v2077 = vlaneseq
          %v2078 = vshrl.u32 %v2077, 7
          %v2079 = vsub.s32 0, %v2078
          %v2080 = vrot.slane %v2075, %v2079
          %v2081 = vlaneseq
          %v2082 = vshrl.u32 %v2081, 7
          %v2083 = vsub.s32 1, %v2082
          %v2084 = vrot.slane %v2075, %v2083
          %v2087 = vmul.f32 %v2058, %v2080
          %v2088 = vmul.f32 %v2059, %v2084
          %v2089 = vmul.f32 %v2060, %v2080
          %v2090 = vmul.f32 %v2061, %v2084
          %v2091 = vmul.f32 %v2062, %v2080
          %v2092 = vmul.f32 %v2063, %v2084
          %v2093 = vmul.f32 %v2064, %v2080
          %v2094 = vmul.f32 %v2065, %v2084
          %v2095 = vmul.f32 %v2066, %v2080
          %v2096 = vmul.f32 %v2067, %v2084
          %v2097 = vmul.f32 %v2068, %v2080
          %v2098 = vmul.f32 %v2069, %v2084
          %v2099 = vmul.f32 %v2070, %v2080
          %v2100 = vmul.f32 %v2071, %v2084
          %v2101 = vmul.f32 %v2072, %v2080
          %v2102 = vmul.f32 %v2073, %v2084
          %2103 = vst [vmem:[%s298] sm:$0xff] %v2087
          %2104 = vst [vmem:[%s298 + $0x8] sm:$0xff] %v2088
          %2105 = vst [vmem:[%s298 + $0x10] sm:$0xff] %v2089
          %2106 = vst [vmem:[%s298 + $0x18] sm:$0xff] %v2090
          %2107 = vst [vmem:[%s298 + $0x20] sm:$0xff] %v2091
          %2108 = vst [vmem:[%s298 + $0x28] sm:$0xff] %v2092
          %2109 = vst [vmem:[%s298 + $0x30] sm:$0xff] %v2093
          %2110 = vst [vmem:[%s298 + $0x38] sm:$0xff] %v2094
          %2111 = vst [vmem:[%s298 + $0x40] sm:$0xff] %v2095
          %2112 = vst [vmem:[%s298 + $0x48] sm:$0xff] %v2096
          %2113 = vst [vmem:[%s298 + $0x50] sm:$0xff] %v2097
          %2114 = vst [vmem:[%s298 + $0x58] sm:$0xff] %v2098
          %2115 = vst [vmem:[%s298 + $0x60] sm:$0xff] %v2099
          %2116 = vst [vmem:[%s298 + $0x68] sm:$0xff] %v2100
          %2117 = vst [vmem:[%s298 + $0x70] sm:$0xff] %v2101
          %2118 = vst [vmem:[%s298 + $0x78] sm:$0xff] %v2102
        $region52: #{tpu_custom_call.1} parent=31 // pred_fallthru
          _
        %s2119 = sand.u32 %s136, 1
        %s2120 = scalar_lea.sflag [#allocation6], %s2119
        %s2121 = sand.u32 %s136, 1
        %s2122 = smul.addr %s2121, 128
        %s2123 = scalar_lea.vmem [#allocation10], %s2122
        // Predicated region
        $region53: #{tpu_custom_call.1} parent=31 // pred_check
          %p2124 = pneg %p146
        $region54: #{tpu_custom_call.1} parent=31 // pred_check_branch
          %2126 = sbr.rel (%p2124) target = $region56
        $region55: #{tpu_custom_call.1} parent=31 // pred_region
          %s2127 = smul.u32 2, %s29
          %s2129 = ssub.s32 2048, 2048
          %2130 = vsyncadd %s2120, %s2129
          %s2131 = smul.addr %s28, 16
          %s2132 = sadd.s32 %s2127, %s2131
          %s2133 = smul.addr %s2132, 128
          %s2134 = scalar_lea.hbm %s3, %s2133
          %s2135 = sshll.u32 %s2123, 4
          %s2136 = int_to_ptr.vmem [resolvable:$true] %s2135
          %2141 = dma.vmem_to_hbm [thread:$0]  %s2136, 2048, %s2134, %s2120, 256, 256, 16
        $region56: #{tpu_custom_call.1} parent=31 // pred_fallthru
          _
      $region32: #{tpu_custom_call.1} parent=5 // pred_fallthru
        _
      %p2142 = scmp.le.s32.totalorder 2, %s18
      // Predicated region
      $region57: #{tpu_custom_call.1} parent=5 // pred_check
        %p2143 = pneg %p2142
      $region58: #{tpu_custom_call.1} parent=5 // pred_check_branch
        %2145 = sbr.rel (%p2143) target = $region60
      $region59: #{tpu_custom_call.1} parent=5 // pred_region
        %s2146 = ssub.s32 %s18, 2
        // Predicated region
        $region61: #{tpu_custom_call.1} parent=59 // pred_check
          %p2147 = pneg %p152
        $region62: #{tpu_custom_call.1} parent=59 // pred_check_branch
          %2149 = sbr.rel (%p2147) target = $region64
        $region63: #{tpu_custom_call.1} parent=59 // pred_region
          %s2150 = sand.u32 %s137, 1
          %s2151 = scalar_lea.sflag [#allocation6], %s2150
          %s2152 = sand.u32 %s137, 1
          %s2153 = smul.addr %s2152, 128
          %s2154 = scalar_lea.vmem [#allocation10], %s2153
          %2155 = dma.done %s2151, 2048
        $region64: #{tpu_custom_call.1} parent=59 // pred_fallthru
          _
      $region60: #{tpu_custom_call.1} parent=5 // pred_fallthru
        _
    $region6: #{tpu_custom_call.1} parent=1 // loop_footer
      %s22 = sadd.s32 1, %s18
    $region7: #{tpu_custom_call.1} parent=1 // loop_footer_branch
      %17 = sbr.rel target = $region3
    $region8: #{tpu_custom_call.1} parent=1 // loop_exit
      _
    %2156 = vsyncpa [#allocation5], 1
    %s2157 = scalar_lea.sflag [#allocation5], 1
    %2158 = vsyncpa %s2157, 1
    %2159 = vsyncpa [#allocation8], 1
    %s2160 = scalar_lea.sflag [#allocation8], 1
    %2161 = vsyncpa %s2160, 1
    %2162 = vsyncpa [#allocation6], 1
    %s2163 = scalar_lea.sflag [#allocation6], 1
    %2164 = vsyncpa %s2163, 1

</llo_original>
